<compile_context>
chip_gen: v6e
topology: v6e:2x2x1
jax: 0.10.0
libtpu: 0.0.40
codegen_flags: <defaults>
</compile_context>

<pallas_src>
import jax
import jax.numpy as jnp
import numpy as np
from jax.experimental import pallas as pl
from jax.experimental.pallas import tpu as pltpu

# ---------------- model hyper-parameters (small, consistent with forward) ----
B = 2            # batch
MAX_LEN = 8      # max_len (sequence length)
VOCAB = 16       # vocab_size
D = 32           # embed_dim
H = 4            # num_heads
DH = D // H      # head dim
FF = 64          # ff_dim
TEMP = 8         # temp_proj_size
LAST = 16        # last_layer_size
LN_EPS = 1e-6

N = B * MAX_LEN  # flattened (batch*seq) rows = 16
PB = 8           # padded batch rows for the head / lane-dense output tile
LANES = 128      # lane width of the slab and of the output tile


# ---------------- parameter-slab layout (row offsets, 128 lanes wide) --------
def _build_layout():
    layout, off = {}, 0

    def add(name, rows):
        nonlocal off
        layout[name] = off
        off += rows

    add('tok_emb', VOCAB)     # (VOCAB, D)   token embedding table
    add('pos', N)             # (N, D)       positional emb, pre-tiled over batch
    add('wq', D)              # (D, D)       1/sqrt(DH) folded in
    add('wk', D)              # (D, D)
    add('wv', D)              # (D, D)
    add('wo', D)              # (D, D)
    add('wff1', FF)           # (FF, D)
    add('wff2t', FF)          # (FF, D) = wff2.T
    add('pool', PB)           # (PB, N)      mean-pool matrix (constant)
    add('wt', TEMP)           # (TEMP, 128)  temporal projection (lanes 0:3 real)
    add('w2a', LAST)          # (LAST, D)    w2 columns acting on pooled features
    add('w2b', LAST)          # (LAST, TEMP) w2 columns acting on temporal features
    add('w3r', LAST)          # (LAST, 128)  w3^T stored in lane 0
    # pre-broadcast biases / LN params (rows == rows of activation they add to)
    for nm in ('bq', 'bk', 'bv', 'bo', 'ln1w', 'ln1b',
               'bff1', 'bff2', 'ln2w', 'ln2b'):
        add(nm, N)
    add('amask', N)           # (N, N)   additive block-diagonal attention mask
    add('hmask', H * N)       # (H*N, D) per-head 0/1 lane masks, pre-broadcast
    add('bt', PB)
    add('b2', PB)
    add('b3', PB)
    return layout, off


LAYOUT, SLAB_ROWS = _build_layout()


# ------------------------------- kernel --------------------------------------
def pt_kernel(dyn_ref, slab_ref, out_ref):
    f32, bf16 = jnp.float32, jnp.bfloat16

    def blk(name, rows, lanes):
        r0 = LAYOUT[name]
        return slab_ref[r0:r0 + rows, 0:lanes]        # bf16 block, static slice

    def mm_t(x, w):   # x(n,d) @ w(o,d)^T -> (n,o), f32 accumulation
        return jnp.einsum('nd,od->no', x.astype(bf16), w,
                          preferred_element_type=f32)

    def mm(x, w):     # x(n,k) @ w(k,d) -> (n,d), f32 accumulation
        return jnp.einsum('nk,kd->nd', x.astype(bf16), w,
                          preferred_element_type=f32)

    def layernorm(x, wname, bname):
        w = blk(wname, N, D).astype(f32)
        b = blk(bname, N, D).astype(f32)
        mu = jnp.mean(x, axis=-1, keepdims=True)
        xc = x - mu
        var = jnp.mean(xc * xc, axis=-1, keepdims=True)
        return xc * jax.lax.rsqrt(var + LN_EPS) * w + b

    # ---- embedding: one-hot gather (matmul) + pre-tiled positional add ------
    tok = dyn_ref[0:N, 0:1].astype(jnp.int32)                        # (N, 1)
    onehot = (tok == jax.lax.broadcasted_iota(jnp.int32, (N, VOCAB), 1))
    h = mm(onehot, blk('tok_emb', VOCAB, D))                         # (N, D) f32
    h = h + blk('pos', N, D).astype(f32)

    # ---- Q/K/V projections (scale pre-folded into wq / bq) ------------------
    q = mm_t(h, blk('wq', D, D)) + blk('bq', N, D).astype(f32)
    k = mm_t(h, blk('wk', D, D)) + blk('bk', N, D).astype(f32)
    v = mm_t(h, blk('wv', D, D)) + blk('bv', N, D).astype(f32)

    # ---- per-head attention without slices/concats ---------------------------
    amask = blk('amask', N, N).astype(f32)                           # (N, N) additive
    attn_cat = jnp.zeros((N, D), f32)
    for hh in range(H):                                              # unrolled, H=4
        r0 = LAYOUT['hmask'] + hh * N
        hm = slab_ref[r0:r0 + N, 0:D]                                # (N, D) 0/1 bf16
        k_h = k.astype(bf16) * hm                                    # zero other heads
        v_h = v.astype(bf16) * hm
        s = jnp.einsum('nd,md->nm', q.astype(bf16), k_h,
                       preferred_element_type=f32) + amask           # (N, N)
        s = s - jnp.max(s, axis=-1, keepdims=True)
        e = jnp.exp(s)
        p = e * pl.reciprocal(jnp.sum(e, axis=-1, keepdims=True), approx=True)
        attn_cat = attn_cat + jnp.einsum('nm,md->nd', p.astype(bf16), v_h,
                                         preferred_element_type=f32)

    attn_out = mm_t(attn_cat, blk('wo', D, D)) + blk('bo', N, D).astype(f32)
    x1 = layernorm(h + attn_out, 'ln1w', 'ln1b')

    # ---- feed-forward block ---------------------------------------------------
    ff = jnp.maximum(
        mm_t(x1, blk('wff1', FF, D)) + blk('bff1', N, FF).astype(f32), 0.0)
    ff2 = mm(ff, blk('wff2t', FF, D)) + blk('bff2', N, D).astype(f32)
    x2 = layernorm(x1 + ff2, 'ln2w', 'ln2b')

    # ---- mean-pool via precomputed pooling matrix (pads batch to PB rows) -----
    pooled = jnp.einsum('pn,nd->pd', blk('pool', PB, N), x2.astype(bf16),
                        preferred_element_type=f32)                  # (PB, D)

    # ---- temporal projection ---------------------------------------------------
    xt = dyn_ref[N:N + PB, :]                                        # (PB, 128) f32
    xt_h = jnp.maximum(
        mm_t(xt, blk('wt', TEMP, LANES)) + blk('bt', PB, TEMP).astype(f32), 0.0)

    # ---- prediction head: concat folded into two matmuls, (8,128) dense store --
    h2 = jnp.maximum(
        mm_t(pooled, blk('w2a', LAST, D))
        + mm_t(xt_h, blk('w2b', LAST, TEMP))
        + blk('b2', PB, LAST).astype(f32), 0.0)                      # (PB, LAST)
    y = mm(h2, blk('w3r', LAST, LANES)) + blk('b3', PB, LANES).astype(f32)
    out_ref[...] = y.astype(out_ref.dtype)                           # (8,128) store
    # NOTE: rows >= B and lanes >= 1 of the output tile are padding garbage; the
    # wrapper slices out the real (B, 1) result and nothing else is consumed.


# ------------------------------- wrapper --------------------------------------
def pack_params(p):
    """Host-side, one-time packing of all parameters + constants into one slab."""
    slab = np.zeros((SLAB_ROWS, LANES), np.float32)

    def put(name, block):
        block = np.asarray(block, np.float32)
        r0 = LAYOUT[name]
        slab[r0:r0 + block.shape[0], :block.shape[1]] = block

    def put_bcast(name, vec, rows):
        v = np.asarray(vec, np.float32).reshape(1, -1)
        put(name, np.tile(v, (rows, 1)))

    scale = 1.0 / float(np.sqrt(DH))

    put('tok_emb', p['tok_emb'])
    put('pos', np.tile(np.asarray(p['pos_emb'], np.float32), (B, 1)))
    put('wq', np.asarray(p['wq'], np.float32) * scale)
    put('wk', p['wk'])
    put('wv', p['wv'])
    put('wo', p['wo'])
    put('wff1', p['wff1'])
    put('wff2t', np.asarray(p['wff2'], np.float32).T)

    pool = np.zeros((PB, N), np.float32)
    for b in range(B):
        pool[b, b * MAX_LEN:(b + 1) * MAX_LEN] = 1.0 / MAX_LEN
    put('pool', pool)

    put('wt', p['wt'])
    w2 = np.asarray(p['w2'], np.float32)
    put('w2a', w2[:, :D])
    put('w2b', w2[:, D:])
    w3r = np.zeros((LAST, LANES), np.float32)
    w3r[:, 0] = np.asarray(p['w3'], np.float32)[0]
    put('w3r', w3r)

    put_bcast('bq', np.asarray(p['bq'], np.float32) * scale, N)
    put_bcast('bk', p['bk'], N)
    put_bcast('bv', p['bv'], N)
    put_bcast('bo', p['bo'], N)
    put_bcast('ln1w', p['ln1w'], N)
    put_bcast('ln1b', p['ln1b'], N)
    put_bcast('bff1', p['bff1'], N)
    put_bcast('bff2', p['bff2'], N)
    put_bcast('ln2w', p['ln2w'], N)
    put_bcast('ln2b', p['ln2b'], N)

    grp = np.arange(N) // MAX_LEN
    amask = np.where(grp[:, None] == grp[None, :], 0.0, -1e30).astype(np.float32)
    put('amask', amask)

    hmask = np.zeros((H * N, D), np.float32)
    for hh in range(H):
        hmask[hh * N:(hh + 1) * N, hh * DH:(hh + 1) * DH] = 1.0
    put('hmask', hmask)

    put_bcast('bt', p['bt'], PB)
    put_bcast('b2', p['b2'], PB)
    put('b3', np.full((PB, LANES), float(np.asarray(p['b3'])[0, 0]), np.float32))

    return jnp.asarray(slab, jnp.bfloat16)


@jax.jit
def pt_model_forward(x_tokens, x_t, slab):
    # dynamic slab: rows 0:N -> tokens (lane 0), rows N:N+PB -> temporal features
    dyn = jnp.zeros((N + PB, LANES), jnp.float32)
    dyn = dyn.at[0:N, 0].set(x_tokens.reshape(-1).astype(jnp.float32))
    dyn = dyn.at[N:N + B, 0:3].set(x_t)

    vmem = pl.BlockSpec(memory_space=pltpu.MemorySpace.VMEM)
    out = pl.pallas_call(
        pt_kernel,
        out_shape=jax.ShapeDtypeStruct((PB, LANES), jnp.float32),
        in_specs=[vmem, vmem],
        out_specs=vmem,
    )(dyn, slab)
    return out[:B, :1]


# ------------------------------ reference -------------------------------------
def ref_forward(x_tokens, x_t, p):
    h = jnp.take(p['tok_emb'], x_tokens, axis=0) + p['pos_emb'][None]
    scale = 1.0 / float(np.sqrt(DH))

    def lin3(x, w, b):
        return jnp.einsum('bli,oi->blo', x, w) + b

    def ln(x, w, b):
        mu = jnp.mean(x, -1, keepdims=True)
        var = jnp.mean((x - mu) ** 2, -1, keepdims=True)
        return (x - mu) / jnp.sqrt(var + LN_EPS) * w + b

    q = lin3(h, p['wq'], p['bq'])
    k = lin3(h, p['wk'], p['bk'])
    v = lin3(h, p['wv'], p['bv'])
    attn = jnp.zeros_like(h) + p['bo']
    for head in range(H):
        sl = slice(head * DH, (head + 1) * DH)
        s = jnp.einsum('bld,bmd->blm', q[:, :, sl], k[:, :, sl]) * scale
        pr = jax.nn.softmax(s, axis=-1)
        oh = jnp.einsum('blm,bmd->bld', pr, v[:, :, sl])
        attn = attn + jnp.einsum('bld,ed->ble', oh, p['wo'][:, sl])
    x1 = ln(h + attn, p['ln1w'], p['ln1b'])
    ff = jax.nn.relu(lin3(x1, p['wff1'], p['bff1']))
    x2 = ln(x1 + lin3(ff, p['wff2'], p['bff2']), p['ln2w'], p['ln2b'])
    pooled = jnp.mean(x2, axis=1)
    xt_h = jax.nn.relu(jnp.einsum('bi,oi->bo', x_t, p['wt']) + p['bt'])
    cat = jnp.concatenate([pooled, xt_h], axis=1)
    h2 = jax.nn.relu(jnp.einsum('bi,oi->bo', cat, p['w2']) + p['b2'])
    return jnp.einsum('bi,oi->bo', h2, p['w3']) + p['b3']


# ------------------------------- params ----------------------------------------
def make_params(key):
    def nrm(k, shape, s=0.05):
        return jax.random.normal(k, shape, jnp.float32) * s

    keys = jax.random.split(key, 24)
    it = iter(keys)
    p = {
        'tok_emb': nrm(next(it), (VOCAB, D), 0.1),
        'pos_emb': nrm(next(it), (MAX_LEN, D), 0.1),
        'wq': nrm(next(it), (D, D)), 'wk': nrm(next(it), (D, D)),
        'wv': nrm(next(it), (D, D)),
        'bq': nrm(next(it), (1, D)), 'bk': nrm(next(it), (1, D)),
        'bv': nrm(next(it), (1, D)),
        'wo': nrm(next(it), (D, D)), 'bo': nrm(next(it), (1, D)),
        'ln1w': jnp.ones((1, D), jnp.float32), 'ln1b': jnp.zeros((1, D), jnp.float32),
        'wff1': nrm(next(it), (FF, D)), 'bff1': nrm(next(it), (1, FF)),
        'wff2': nrm(next(it), (D, FF)), 'bff2': nrm(next(it), (1, D)),
        'ln2w': jnp.ones((1, D), jnp.float32), 'ln2b': jnp.zeros((1, D), jnp.float32),
        'wt': nrm(next(it), (TEMP, 3)), 'bt': nrm(next(it), (1, TEMP)),
        'w2': nrm(next(it), (LAST, D + TEMP)), 'b2': nrm(next(it), (1, LAST)),
        'w3': nrm(next(it), (1, LAST)), 'b3': nrm(next(it), (1, 1)),
    }
    return p


# ------------------------------- main ------------------------------------------
if __name__ == "__main__":
    root = jax.random.PRNGKey(0)
    k_par, k_tok, k_time = jax.random.split(root, 3)

    params = make_params(k_par)
    x_tokens = jax.random.randint(k_tok, (B, MAX_LEN), 0, VOCAB, jnp.int32)
    x_t = jax.random.normal(k_time, (B, 3), jnp.float32)

    slab = pack_params(params)                   # one-time host-side packing

    y = pt_model_forward(x_tokens, x_t, slab)
    y = jax.block_until_ready(y)

    y_ref = ref_forward(x_tokens, x_t, params)
    np.testing.assert_allclose(np.asarray(y), np.asarray(y_ref),
                               rtol=1e-2, atol=1e-2)

    assert y.shape == (B, 1)
    print("KERNEL_OK")
</pallas_src>

<mosaic_0001>
module attributes {stable_mosaic.version = 11 : i64} {
  func.func @pt_kernel(%arg0: memref<24x128xf32, #tpu.memory_space<vmem>>, %arg1: memref<616x128xbf16, #tpu.memory_space<vmem>>, %arg2: memref<8x128xf32, #tpu.memory_space<vmem>>) attributes {dimension_semantics = [], scalar_prefetch = 0 : i64, scratch_operands = 0 : i64, tpu.core_type = #tpu.core_type<tc>} {
    %c0 = arith.constant 0 : index
    %c0_0 = arith.constant 0 : index
    %0 = vector.load %arg0[%c0, %c0_0] : memref<24x128xf32, #tpu.memory_space<vmem>>, vector<16x1xf32>
    %1 = arith.fptosi %0 : vector<16x1xf32> to vector<16x1xi32>
    %2 = tpu.iota {dimensions = array<i32: 1>} : vector<16x16xi32>
    %3 = vector.broadcast %1 : vector<16x1xi32> to vector<16x16xi32>
    %4 = arith.cmpi eq, %3, %2 : vector<16x16xi32>
    %c0_1 = arith.constant 0 : index
    %c0_2 = arith.constant 0 : index
    %5 = vector.load %arg1[%c0_1, %c0_2] : memref<616x128xbf16, #tpu.memory_space<vmem>>, vector<16x32xbf16>
    %6 = arith.extui %4 : vector<16x16xi1> to vector<16x16xi32>
    %7 = arith.sitofp %6 : vector<16x16xi32> to vector<16x16xf32>
    %8 = arith.truncf %7 : vector<16x16xf32> to vector<16x16xbf16>
    "tpu.trace_start"() <{level = 10 : i32, message = "nk,kd->nd"}> : () -> ()
    %cst = arith.constant dense<0.000000e+00> : vector<16x32xf32>
    %9 = tpu.matmul %8, %5, %cst {dimension_numbers = #tpu.dot_dimension_numbers<[1], [0], [0], [1], [0, 0, 1, 1], [], []>} : vector<16x16xbf16>, vector<16x32xbf16>, vector<16x32xf32> -> vector<16x32xf32>
    "tpu.trace_stop"() : () -> ()
    %c16 = arith.constant 16 : index
    %c0_3 = arith.constant 0 : index
    %10 = vector.load %arg1[%c16, %c0_3] : memref<616x128xbf16, #tpu.memory_space<vmem>>, vector<16x32xbf16>
    %11 = arith.extf %10 : vector<16x32xbf16> to vector<16x32xf32>
    %12 = arith.addf %9, %11 : vector<16x32xf32>
    %c32 = arith.constant 32 : index
    %c0_4 = arith.constant 0 : index
    %13 = vector.load %arg1[%c32, %c0_4] : memref<616x128xbf16, #tpu.memory_space<vmem>>, vector<32x32xbf16>
    %14 = arith.truncf %12 : vector<16x32xf32> to vector<16x32xbf16>
    "tpu.trace_start"() <{level = 10 : i32, message = "nd,od->no"}> : () -> ()
    %cst_5 = arith.constant dense<0.000000e+00> : vector<16x32xf32>
    %15 = tpu.matmul %14, %13, %cst_5 {dimension_numbers = #tpu.dot_dimension_numbers<[1], [1], [0], [0], [0, 0, 1, 0], [], []>} : vector<16x32xbf16>, vector<32x32xbf16>, vector<16x32xf32> -> vector<16x32xf32>
    "tpu.trace_stop"() : () -> ()
    %c352 = arith.constant 352 : index
    %c0_6 = arith.constant 0 : index
    %16 = vector.load %arg1[%c352, %c0_6] : memref<616x128xbf16, #tpu.memory_space<vmem>>, vector<16x32xbf16>
    %17 = arith.extf %16 : vector<16x32xbf16> to vector<16x32xf32>
    %18 = arith.addf %15, %17 : vector<16x32xf32>
    %c64 = arith.constant 64 : index
    %c0_7 = arith.constant 0 : index
    %19 = vector.load %arg1[%c64, %c0_7] : memref<616x128xbf16, #tpu.memory_space<vmem>>, vector<32x32xbf16>
    %20 = arith.truncf %12 : vector<16x32xf32> to vector<16x32xbf16>
    "tpu.trace_start"() <{level = 10 : i32, message = "nd,od->no"}> : () -> ()
    %cst_8 = arith.constant dense<0.000000e+00> : vector<16x32xf32>
    %21 = tpu.matmul %20, %19, %cst_8 {dimension_numbers = #tpu.dot_dimension_numbers<[1], [1], [0], [0], [0, 0, 1, 0], [], []>} : vector<16x32xbf16>, vector<32x32xbf16>, vector<16x32xf32> -> vector<16x32xf32>
    "tpu.trace_stop"() : () -> ()
    %c368 = arith.constant 368 : index
    %c0_9 = arith.constant 0 : index
    %22 = vector.load %arg1[%c368, %c0_9] : memref<616x128xbf16, #tpu.memory_space<vmem>>, vector<16x32xbf16>
    %23 = arith.extf %22 : vector<16x32xbf16> to vector<16x32xf32>
    %24 = arith.addf %21, %23 : vector<16x32xf32>
    %c96 = arith.constant 96 : index
    %c0_10 = arith.constant 0 : index
    %25 = vector.load %arg1[%c96, %c0_10] : memref<616x128xbf16, #tpu.memory_space<vmem>>, vector<32x32xbf16>
    %26 = arith.truncf %12 : vector<16x32xf32> to vector<16x32xbf16>
    "tpu.trace_start"() <{level = 10 : i32, message = "nd,od->no"}> : () -> ()
    %cst_11 = arith.constant dense<0.000000e+00> : vector<16x32xf32>
    %27 = tpu.matmul %26, %25, %cst_11 {dimension_numbers = #tpu.dot_dimension_numbers<[1], [1], [0], [0], [0, 0, 1, 0], [], []>} : vector<16x32xbf16>, vector<32x32xbf16>, vector<16x32xf32> -> vector<16x32xf32>
    "tpu.trace_stop"() : () -> ()
    %c384 = arith.constant 384 : index
    %c0_12 = arith.constant 0 : index
    %28 = vector.load %arg1[%c384, %c0_12] : memref<616x128xbf16, #tpu.memory_space<vmem>>, vector<16x32xbf16>
    %29 = arith.extf %28 : vector<16x32xbf16> to vector<16x32xf32>
    %30 = arith.addf %27, %29 : vector<16x32xf32>
    %c512 = arith.constant 512 : index
    %c0_13 = arith.constant 0 : index
    %31 = vector.load %arg1[%c512, %c0_13] : memref<616x128xbf16, #tpu.memory_space<vmem>>, vector<16x16xbf16>
    %32 = arith.extf %31 : vector<16x16xbf16> to vector<16x16xf32>
    %cst_14 = arith.constant 0.000000e+00 : f32
    %33 = vector.broadcast %cst_14 : f32 to vector<16x32xf32>
    %c528 = arith.constant 528 : index
    %c0_15 = arith.constant 0 : index
    %34 = vector.load %arg1[%c528, %c0_15] : memref<616x128xbf16, #tpu.memory_space<vmem>>, vector<16x32xbf16>
    %35 = arith.truncf %24 : vector<16x32xf32> to vector<16x32xbf16>
    %36 = arith.mulf %35, %34 : vector<16x32xbf16>
    %37 = arith.truncf %30 : vector<16x32xf32> to vector<16x32xbf16>
    %38 = arith.mulf %37, %34 : vector<16x32xbf16>
    %39 = arith.truncf %18 : vector<16x32xf32> to vector<16x32xbf16>
    "tpu.trace_start"() <{level = 10 : i32, message = "nd,md->nm"}> : () -> ()
    %cst_16 = arith.constant dense<0.000000e+00> : vector<16x16xf32>
    %40 = tpu.matmul %39, %36, %cst_16 {dimension_numbers = #tpu.dot_dimension_numbers<[1], [1], [0], [0], [0, 0, 1, 0], [], []>} : vector<16x32xbf16>, vector<16x32xbf16>, vector<16x16xf32> -> vector<16x16xf32>
    "tpu.trace_stop"() : () -> ()
    %41 = arith.addf %40, %32 : vector<16x16xf32>
    %cst_17 = arith.constant dense<0xFF800000> : vector<16xf32>
    %42 = vector.multi_reduction <maximumf>, %41, %cst_17 [1] : vector<16x16xf32> to vector<16xf32>
    %43 = vector.shape_cast %42 : vector<16xf32> to vector<16x1xf32>
    %44 = vector.broadcast %43 : vector<16x1xf32> to vector<16x16xf32>
    %45 = arith.subf %41, %44 : vector<16x16xf32>
    %46 = math.exp %45 : vector<16x16xf32>
    %cst_18 = arith.constant dense<0.000000e+00> : vector<16xf32>
    %47 = vector.multi_reduction <add>, %46, %cst_18 [1] : vector<16x16xf32> to vector<16xf32>
    %48 = vector.shape_cast %47 : vector<16xf32> to vector<16x1xf32>
    %49 = tpu.reciprocal %48 {approx = true} : vector<16x1xf32> -> vector<16x1xf32>
    %50 = vector.broadcast %49 : vector<16x1xf32> to vector<16x16xf32>
    %51 = arith.mulf %46, %50 : vector<16x16xf32>
    %52 = arith.truncf %51 : vector<16x16xf32> to vector<16x16xbf16>
    "tpu.trace_start"() <{level = 10 : i32, message = "nm,md->nd"}> : () -> ()
    %cst_19 = arith.constant dense<0.000000e+00> : vector<16x32xf32>
    %53 = tpu.matmul %52, %38, %cst_19 {dimension_numbers = #tpu.dot_dimension_numbers<[1], [0], [0], [1], [0, 0, 1, 1], [], []>} : vector<16x16xbf16>, vector<16x32xbf16>, vector<16x32xf32> -> vector<16x32xf32>
    "tpu.trace_stop"() : () -> ()
    %54 = arith.addf %33, %53 : vector<16x32xf32>
    %c544 = arith.constant 544 : index
    %c0_20 = arith.constant 0 : index
    %55 = vector.load %arg1[%c544, %c0_20] : memref<616x128xbf16, #tpu.memory_space<vmem>>, vector<16x32xbf16>
    %56 = arith.truncf %24 : vector<16x32xf32> to vector<16x32xbf16>
    %57 = arith.mulf %56, %55 : vector<16x32xbf16>
    %58 = arith.truncf %30 : vector<16x32xf32> to vector<16x32xbf16>
    %59 = arith.mulf %58, %55 : vector<16x32xbf16>
    %60 = arith.truncf %18 : vector<16x32xf32> to vector<16x32xbf16>
    "tpu.trace_start"() <{level = 10 : i32, message = "nd,md->nm"}> : () -> ()
    %cst_21 = arith.constant dense<0.000000e+00> : vector<16x16xf32>
    %61 = tpu.matmul %60, %57, %cst_21 {dimension_numbers = #tpu.dot_dimension_numbers<[1], [1], [0], [0], [0, 0, 1, 0], [], []>} : vector<16x32xbf16>, vector<16x32xbf16>, vector<16x16xf32> -> vector<16x16xf32>
    "tpu.trace_stop"() : () -> ()
    %62 = arith.addf %61, %32 : vector<16x16xf32>
    %cst_22 = arith.constant dense<0xFF800000> : vector<16xf32>
    %63 = vector.multi_reduction <maximumf>, %62, %cst_22 [1] : vector<16x16xf32> to vector<16xf32>
    %64 = vector.shape_cast %63 : vector<16xf32> to vector<16x1xf32>
    %65 = vector.broadcast %64 : vector<16x1xf32> to vector<16x16xf32>
    %66 = arith.subf %62, %65 : vector<16x16xf32>
    %67 = math.exp %66 : vector<16x16xf32>
    %cst_23 = arith.constant dense<0.000000e+00> : vector<16xf32>
    %68 = vector.multi_reduction <add>, %67, %cst_23 [1] : vector<16x16xf32> to vector<16xf32>
    %69 = vector.shape_cast %68 : vector<16xf32> to vector<16x1xf32>
    %70 = tpu.reciprocal %69 {approx = true} : vector<16x1xf32> -> vector<16x1xf32>
    %71 = vector.broadcast %70 : vector<16x1xf32> to vector<16x16xf32>
    %72 = arith.mulf %67, %71 : vector<16x16xf32>
    %73 = arith.truncf %72 : vector<16x16xf32> to vector<16x16xbf16>
    "tpu.trace_start"() <{level = 10 : i32, message = "nm,md->nd"}> : () -> ()
    %cst_24 = arith.constant dense<0.000000e+00> : vector<16x32xf32>
    %74 = tpu.matmul %73, %59, %cst_24 {dimension_numbers = #tpu.dot_dimension_numbers<[1], [0], [0], [1], [0, 0, 1, 1], [], []>} : vector<16x16xbf16>, vector<16x32xbf16>, vector<16x32xf32> -> vector<16x32xf32>
    "tpu.trace_stop"() : () -> ()
    %75 = arith.addf %54, %74 : vector<16x32xf32>
    %c560 = arith.constant 560 : index
    %c0_25 = arith.constant 0 : index
    %76 = vector.load %arg1[%c560, %c0_25] : memref<616x128xbf16, #tpu.memory_space<vmem>>, vector<16x32xbf16>
    %77 = arith.truncf %24 : vector<16x32xf32> to vector<16x32xbf16>
    %78 = arith.mulf %77, %76 : vector<16x32xbf16>
    %79 = arith.truncf %30 : vector<16x32xf32> to vector<16x32xbf16>
    %80 = arith.mulf %79, %76 : vector<16x32xbf16>
    %81 = arith.truncf %18 : vector<16x32xf32> to vector<16x32xbf16>
    "tpu.trace_start"() <{level = 10 : i32, message = "nd,md->nm"}> : () -> ()
    %cst_26 = arith.constant dense<0.000000e+00> : vector<16x16xf32>
    %82 = tpu.matmul %81, %78, %cst_26 {dimension_numbers = #tpu.dot_dimension_numbers<[1], [1], [0], [0], [0, 0, 1, 0], [], []>} : vector<16x32xbf16>, vector<16x32xbf16>, vector<16x16xf32> -> vector<16x16xf32>
    "tpu.trace_stop"() : () -> ()
    %83 = arith.addf %82, %32 : vector<16x16xf32>
    %cst_27 = arith.constant dense<0xFF800000> : vector<16xf32>
    %84 = vector.multi_reduction <maximumf>, %83, %cst_27 [1] : vector<16x16xf32> to vector<16xf32>
    %85 = vector.shape_cast %84 : vector<16xf32> to vector<16x1xf32>
    %86 = vector.broadcast %85 : vector<16x1xf32> to vector<16x16xf32>
    %87 = arith.subf %83, %86 : vector<16x16xf32>
    %88 = math.exp %87 : vector<16x16xf32>
    %cst_28 = arith.constant dense<0.000000e+00> : vector<16xf32>
    %89 = vector.multi_reduction <add>, %88, %cst_28 [1] : vector<16x16xf32> to vector<16xf32>
    %90 = vector.shape_cast %89 : vector<16xf32> to vector<16x1xf32>
    %91 = tpu.reciprocal %90 {approx = true} : vector<16x1xf32> -> vector<16x1xf32>
    %92 = vector.broadcast %91 : vector<16x1xf32> to vector<16x16xf32>
    %93 = arith.mulf %88, %92 : vector<16x16xf32>
    %94 = arith.truncf %93 : vector<16x16xf32> to vector<16x16xbf16>
    "tpu.trace_start"() <{level = 10 : i32, message = "nm,md->nd"}> : () -> ()
    %cst_29 = arith.constant dense<0.000000e+00> : vector<16x32xf32>
    %95 = tpu.matmul %94, %80, %cst_29 {dimension_numbers = #tpu.dot_dimension_numbers<[1], [0], [0], [1], [0, 0, 1, 1], [], []>} : vector<16x16xbf16>, vector<16x32xbf16>, vector<16x32xf32> -> vector<16x32xf32>
    "tpu.trace_stop"() : () -> ()
    %96 = arith.addf %75, %95 : vector<16x32xf32>
    %c576 = arith.constant 576 : index
    %c0_30 = arith.constant 0 : index
    %97 = vector.load %arg1[%c576, %c0_30] : memref<616x128xbf16, #tpu.memory_space<vmem>>, vector<16x32xbf16>
    %98 = arith.truncf %24 : vector<16x32xf32> to vector<16x32xbf16>
    %99 = arith.mulf %98, %97 : vector<16x32xbf16>
    %100 = arith.truncf %30 : vector<16x32xf32> to vector<16x32xbf16>
    %101 = arith.mulf %100, %97 : vector<16x32xbf16>
    %102 = arith.truncf %18 : vector<16x32xf32> to vector<16x32xbf16>
    "tpu.trace_start"() <{level = 10 : i32, message = "nd,md->nm"}> : () -> ()
    %cst_31 = arith.constant dense<0.000000e+00> : vector<16x16xf32>
    %103 = tpu.matmul %102, %99, %cst_31 {dimension_numbers = #tpu.dot_dimension_numbers<[1], [1], [0], [0], [0, 0, 1, 0], [], []>} : vector<16x32xbf16>, vector<16x32xbf16>, vector<16x16xf32> -> vector<16x16xf32>
    "tpu.trace_stop"() : () -> ()
    %104 = arith.addf %103, %32 : vector<16x16xf32>
    %cst_32 = arith.constant dense<0xFF800000> : vector<16xf32>
    %105 = vector.multi_reduction <maximumf>, %104, %cst_32 [1] : vector<16x16xf32> to vector<16xf32>
    %106 = vector.shape_cast %105 : vector<16xf32> to vector<16x1xf32>
    %107 = vector.broadcast %106 : vector<16x1xf32> to vector<16x16xf32>
    %108 = arith.subf %104, %107 : vector<16x16xf32>
    %109 = math.exp %108 : vector<16x16xf32>
    %cst_33 = arith.constant dense<0.000000e+00> : vector<16xf32>
    %110 = vector.multi_reduction <add>, %109, %cst_33 [1] : vector<16x16xf32> to vector<16xf32>
    %111 = vector.shape_cast %110 : vector<16xf32> to vector<16x1xf32>
    %112 = tpu.reciprocal %111 {approx = true} : vector<16x1xf32> -> vector<16x1xf32>
    %113 = vector.broadcast %112 : vector<16x1xf32> to vector<16x16xf32>
    %114 = arith.mulf %109, %113 : vector<16x16xf32>
    %115 = arith.truncf %114 : vector<16x16xf32> to vector<16x16xbf16>
    "tpu.trace_start"() <{level = 10 : i32, message = "nm,md->nd"}> : () -> ()
    %cst_34 = arith.constant dense<0.000000e+00> : vector<16x32xf32>
    %116 = tpu.matmul %115, %101, %cst_34 {dimension_numbers = #tpu.dot_dimension_numbers<[1], [0], [0], [1], [0, 0, 1, 1], [], []>} : vector<16x16xbf16>, vector<16x32xbf16>, vector<16x32xf32> -> vector<16x32xf32>
    "tpu.trace_stop"() : () -> ()
    %117 = arith.addf %96, %116 : vector<16x32xf32>
    %c128 = arith.constant 128 : index
    %c0_35 = arith.constant 0 : index
    %118 = vector.load %arg1[%c128, %c0_35] : memref<616x128xbf16, #tpu.memory_space<vmem>>, vector<32x32xbf16>
    %119 = arith.truncf %117 : vector<16x32xf32> to vector<16x32xbf16>
    "tpu.trace_start"() <{level = 10 : i32, message = "nd,od->no"}> : () -> ()
    %cst_36 = arith.constant dense<0.000000e+00> : vector<16x32xf32>
    %120 = tpu.matmul %119, %118, %cst_36 {dimension_numbers = #tpu.dot_dimension_numbers<[1], [1], [0], [0], [0, 0, 1, 0], [], []>} : vector<16x32xbf16>, vector<32x32xbf16>, vector<16x32xf32> -> vector<16x32xf32>
    "tpu.trace_stop"() : () -> ()
    %c400 = arith.constant 400 : index
    %c0_37 = arith.constant 0 : index
    %121 = vector.load %arg1[%c400, %c0_37] : memref<616x128xbf16, #tpu.memory_space<vmem>>, vector<16x32xbf16>
    %122 = arith.extf %121 : vector<16x32xbf16> to vector<16x32xf32>
    %123 = arith.addf %120, %122 : vector<16x32xf32>
    %124 = arith.addf %12, %123 : vector<16x32xf32>
    %c416 = arith.constant 416 : index
    %c0_38 = arith.constant 0 : index
    %125 = vector.load %arg1[%c416, %c0_38] : memref<616x128xbf16, #tpu.memory_space<vmem>>, vector<16x32xbf16>
    %126 = arith.extf %125 : vector<16x32xbf16> to vector<16x32xf32>
    %c432 = arith.constant 432 : index
    %c0_39 = arith.constant 0 : index
    %127 = vector.load %arg1[%c432, %c0_39] : memref<616x128xbf16, #tpu.memory_space<vmem>>, vector<16x32xbf16>
    %128 = arith.extf %127 : vector<16x32xbf16> to vector<16x32xf32>
    %cst_40 = arith.constant dense<0.000000e+00> : vector<16xf32>
    %129 = vector.multi_reduction <add>, %124, %cst_40 [1] : vector<16x32xf32> to vector<16xf32>
    %130 = vector.shape_cast %129 : vector<16xf32> to vector<16x1xf32>
    %cst_41 = arith.constant 3.200000e+01 : f32
    %131 = vector.broadcast %cst_41 : f32 to vector<16x1xf32>
    %132 = arith.divf %130, %131 : vector<16x1xf32>
    %133 = vector.broadcast %132 : vector<16x1xf32> to vector<16x32xf32>
    %134 = arith.subf %124, %133 : vector<16x32xf32>
    %135 = arith.mulf %134, %134 : vector<16x32xf32>
    %cst_42 = arith.constant dense<0.000000e+00> : vector<16xf32>
    %136 = vector.multi_reduction <add>, %135, %cst_42 [1] : vector<16x32xf32> to vector<16xf32>
    %137 = vector.shape_cast %136 : vector<16xf32> to vector<16x1xf32>
    %cst_43 = arith.constant 3.200000e+01 : f32
    %138 = vector.broadcast %cst_43 : f32 to vector<16x1xf32>
    %139 = arith.divf %137, %138 : vector<16x1xf32>
    %cst_44 = arith.constant 9.99999997E-7 : f32
    %140 = vector.broadcast %cst_44 : f32 to vector<16x1xf32>
    %141 = arith.addf %139, %140 : vector<16x1xf32>
    %142 = math.rsqrt %141 : vector<16x1xf32>
    %143 = vector.broadcast %142 : vector<16x1xf32> to vector<16x32xf32>
    %144 = arith.mulf %134, %143 : vector<16x32xf32>
    %145 = arith.mulf %144, %126 : vector<16x32xf32>
    %146 = arith.addf %145, %128 : vector<16x32xf32>
    %c160 = arith.constant 160 : index
    %c0_45 = arith.constant 0 : index
    %147 = vector.load %arg1[%c160, %c0_45] : memref<616x128xbf16, #tpu.memory_space<vmem>>, vector<64x32xbf16>
    %148 = arith.truncf %146 : vector<16x32xf32> to vector<16x32xbf16>
    "tpu.trace_start"() <{level = 10 : i32, message = "nd,od->no"}> : () -> ()
    %cst_46 = arith.constant dense<0.000000e+00> : vector<16x64xf32>
    %149 = tpu.matmul %148, %147, %cst_46 {dimension_numbers = #tpu.dot_dimension_numbers<[1], [1], [0], [0], [0, 0, 1, 0], [], []>} : vector<16x32xbf16>, vector<64x32xbf16>, vector<16x64xf32> -> vector<16x64xf32>
    "tpu.trace_stop"() : () -> ()
    %c448 = arith.constant 448 : index
    %c0_47 = arith.constant 0 : index
    %150 = vector.load %arg1[%c448, %c0_47] : memref<616x128xbf16, #tpu.memory_space<vmem>>, vector<16x64xbf16>
    %151 = arith.extf %150 : vector<16x64xbf16> to vector<16x64xf32>
    %152 = arith.addf %149, %151 : vector<16x64xf32>
    %cst_48 = arith.constant 0.000000e+00 : f32
    %153 = vector.broadcast %cst_48 : f32 to vector<16x64xf32>
    %154 = arith.maximumf %152, %153 : vector<16x64xf32>
    %c224 = arith.constant 224 : index
    %c0_49 = arith.constant 0 : index
    %155 = vector.load %arg1[%c224, %c0_49] : memref<616x128xbf16, #tpu.memory_space<vmem>>, vector<64x32xbf16>
    %156 = arith.truncf %154 : vector<16x64xf32> to vector<16x64xbf16>
    "tpu.trace_start"() <{level = 10 : i32, message = "nk,kd->nd"}> : () -> ()
    %cst_50 = arith.constant dense<0.000000e+00> : vector<16x32xf32>
    %157 = tpu.matmul %156, %155, %cst_50 {dimension_numbers = #tpu.dot_dimension_numbers<[1], [0], [0], [1], [0, 0, 1, 1], [], []>} : vector<16x64xbf16>, vector<64x32xbf16>, vector<16x32xf32> -> vector<16x32xf32>
    "tpu.trace_stop"() : () -> ()
    %c464 = arith.constant 464 : index
    %c0_51 = arith.constant 0 : index
    %158 = vector.load %arg1[%c464, %c0_51] : memref<616x128xbf16, #tpu.memory_space<vmem>>, vector<16x32xbf16>
    %159 = arith.extf %158 : vector<16x32xbf16> to vector<16x32xf32>
    %160 = arith.addf %157, %159 : vector<16x32xf32>
    %161 = arith.addf %146, %160 : vector<16x32xf32>
    %c480 = arith.constant 480 : index
    %c0_52 = arith.constant 0 : index
    %162 = vector.load %arg1[%c480, %c0_52] : memref<616x128xbf16, #tpu.memory_space<vmem>>, vector<16x32xbf16>
    %163 = arith.extf %162 : vector<16x32xbf16> to vector<16x32xf32>
    %c496 = arith.constant 496 : index
    %c0_53 = arith.constant 0 : index
    %164 = vector.load %arg1[%c496, %c0_53] : memref<616x128xbf16, #tpu.memory_space<vmem>>, vector<16x32xbf16>
    %165 = arith.extf %164 : vector<16x32xbf16> to vector<16x32xf32>
    %cst_54 = arith.constant dense<0.000000e+00> : vector<16xf32>
    %166 = vector.multi_reduction <add>, %161, %cst_54 [1] : vector<16x32xf32> to vector<16xf32>
    %167 = vector.shape_cast %166 : vector<16xf32> to vector<16x1xf32>
    %cst_55 = arith.constant 3.200000e+01 : f32
    %168 = vector.broadcast %cst_55 : f32 to vector<16x1xf32>
    %169 = arith.divf %167, %168 : vector<16x1xf32>
    %170 = vector.broadcast %169 : vector<16x1xf32> to vector<16x32xf32>
    %171 = arith.subf %161, %170 : vector<16x32xf32>
    %172 = arith.mulf %171, %171 : vector<16x32xf32>
    %cst_56 = arith.constant dense<0.000000e+00> : vector<16xf32>
    %173 = vector.multi_reduction <add>, %172, %cst_56 [1] : vector<16x32xf32> to vector<16xf32>
    %174 = vector.shape_cast %173 : vector<16xf32> to vector<16x1xf32>
    %cst_57 = arith.constant 3.200000e+01 : f32
    %175 = vector.broadcast %cst_57 : f32 to vector<16x1xf32>
    %176 = arith.divf %174, %175 : vector<16x1xf32>
    %cst_58 = arith.constant 9.99999997E-7 : f32
    %177 = vector.broadcast %cst_58 : f32 to vector<16x1xf32>
    %178 = arith.addf %176, %177 : vector<16x1xf32>
    %179 = math.rsqrt %178 : vector<16x1xf32>
    %180 = vector.broadcast %179 : vector<16x1xf32> to vector<16x32xf32>
    %181 = arith.mulf %171, %180 : vector<16x32xf32>
    %182 = arith.mulf %181, %163 : vector<16x32xf32>
    %183 = arith.addf %182, %165 : vector<16x32xf32>
    %c288 = arith.constant 288 : index
    %c0_59 = arith.constant 0 : index
    %184 = vector.load %arg1[%c288, %c0_59] : memref<616x128xbf16, #tpu.memory_space<vmem>>, vector<8x16xbf16>
    %185 = arith.truncf %183 : vector<16x32xf32> to vector<16x32xbf16>
    "tpu.trace_start"() <{level = 10 : i32, message = "pn,nd->pd"}> : () -> ()
    %cst_60 = arith.constant dense<0.000000e+00> : vector<8x32xf32>
    %186 = tpu.matmul %184, %185, %cst_60 {dimension_numbers = #tpu.dot_dimension_numbers<[1], [0], [0], [1], [0, 0, 1, 1], [], []>} : vector<8x16xbf16>, vector<16x32xbf16>, vector<8x32xf32> -> vector<8x32xf32>
    "tpu.trace_stop"() : () -> ()
    %c16_61 = arith.constant 16 : index
    %c0_62 = arith.constant 0 : index
    %187 = vector.load %arg0[%c16_61, %c0_62] : memref<24x128xf32, #tpu.memory_space<vmem>>, vector<8x128xf32>
    %c296 = arith.constant 296 : index
    %c0_63 = arith.constant 0 : index
    %188 = vector.load %arg1[%c296, %c0_63] : memref<616x128xbf16, #tpu.memory_space<vmem>>, vector<8x128xbf16>
    %189 = arith.truncf %187 : vector<8x128xf32> to vector<8x128xbf16>
    "tpu.trace_start"() <{level = 10 : i32, message = "nd,od->no"}> : () -> ()
    %cst_64 = arith.constant dense<0.000000e+00> : vector<8x8xf32>
    %190 = tpu.matmul %189, %188, %cst_64 {dimension_numbers = #tpu.dot_dimension_numbers<[1], [1], [0], [0], [0, 0, 1, 0], [], []>} : vector<8x128xbf16>, vector<8x128xbf16>, vector<8x8xf32> -> vector<8x8xf32>
    "tpu.trace_stop"() : () -> ()
    %c592 = arith.constant 592 : index
    %c0_65 = arith.constant 0 : index
    %191 = vector.load %arg1[%c592, %c0_65] : memref<616x128xbf16, #tpu.memory_space<vmem>>, vector<8x8xbf16>
    %192 = arith.extf %191 : vector<8x8xbf16> to vector<8x8xf32>
    %193 = arith.addf %190, %192 : vector<8x8xf32>
    %cst_66 = arith.constant 0.000000e+00 : f32
    %194 = vector.broadcast %cst_66 : f32 to vector<8x8xf32>
    %195 = arith.maximumf %193, %194 : vector<8x8xf32>
    %c304 = arith.constant 304 : index
    %c0_67 = arith.constant 0 : index
    %196 = vector.load %arg1[%c304, %c0_67] : memref<616x128xbf16, #tpu.memory_space<vmem>>, vector<16x32xbf16>
    %197 = arith.truncf %186 : vector<8x32xf32> to vector<8x32xbf16>
    "tpu.trace_start"() <{level = 10 : i32, message = "nd,od->no"}> : () -> ()
    %cst_68 = arith.constant dense<0.000000e+00> : vector<8x16xf32>
    %198 = tpu.matmul %197, %196, %cst_68 {dimension_numbers = #tpu.dot_dimension_numbers<[1], [1], [0], [0], [0, 0, 1, 0], [], []>} : vector<8x32xbf16>, vector<16x32xbf16>, vector<8x16xf32> -> vector<8x16xf32>
    "tpu.trace_stop"() : () -> ()
    %c320 = arith.constant 320 : index
    %c0_69 = arith.constant 0 : index
    %199 = vector.load %arg1[%c320, %c0_69] : memref<616x128xbf16, #tpu.memory_space<vmem>>, vector<16x8xbf16>
    %200 = arith.truncf %195 : vector<8x8xf32> to vector<8x8xbf16>
    "tpu.trace_start"() <{level = 10 : i32, message = "nd,od->no"}> : () -> ()
    %cst_70 = arith.constant dense<0.000000e+00> : vector<8x16xf32>
    %201 = tpu.matmul %200, %199, %cst_70 {dimension_numbers = #tpu.dot_dimension_numbers<[1], [1], [0], [0], [0, 0, 1, 0], [], []>} : vector<8x8xbf16>, vector<16x8xbf16>, vector<8x16xf32> -> vector<8x16xf32>
    "tpu.trace_stop"() : () -> ()
    %202 = arith.addf %198, %201 : vector<8x16xf32>
    %c600 = arith.constant 600 : index
    %c0_71 = arith.constant 0 : index
    %203 = vector.load %arg1[%c600, %c0_71] : memref<616x128xbf16, #tpu.memory_space<vmem>>, vector<8x16xbf16>
    %204 = arith.extf %203 : vector<8x16xbf16> to vector<8x16xf32>
    %205 = arith.addf %202, %204 : vector<8x16xf32>
    %cst_72 = arith.constant 0.000000e+00 : f32
    %206 = vector.broadcast %cst_72 : f32 to vector<8x16xf32>
    %207 = arith.maximumf %205, %206 : vector<8x16xf32>
    %c336 = arith.constant 336 : index
    %c0_73 = arith.constant 0 : index
    %208 = vector.load %arg1[%c336, %c0_73] : memref<616x128xbf16, #tpu.memory_space<vmem>>, vector<16x128xbf16>
    %209 = arith.truncf %207 : vector<8x16xf32> to vector<8x16xbf16>
    "tpu.trace_start"() <{level = 10 : i32, message = "nk,kd->nd"}> : () -> ()
    %cst_74 = arith.constant dense<0.000000e+00> : vector<8x128xf32>
    %210 = tpu.matmul %209, %208, %cst_74 {dimension_numbers = #tpu.dot_dimension_numbers<[1], [0], [0], [1], [0, 0, 1, 1], [], []>} : vector<8x16xbf16>, vector<16x128xbf16>, vector<8x128xf32> -> vector<8x128xf32>
    "tpu.trace_stop"() : () -> ()
    %c608 = arith.constant 608 : index
    %c0_75 = arith.constant 0 : index
    %211 = vector.load %arg1[%c608, %c0_75] : memref<616x128xbf16, #tpu.memory_space<vmem>>, vector<8x128xbf16>
    %212 = arith.extf %211 : vector<8x128xbf16> to vector<8x128xf32>
    %213 = arith.addf %210, %212 : vector<8x128xf32>
    %c0_76 = arith.constant 0 : index
    %c0_77 = arith.constant 0 : index
    %214 = vector.load %arg2[%c0_76, %c0_77] : memref<8x128xf32, #tpu.memory_space<vmem>>, vector<8x128xf32>
    tpu.vector_store %arg2[%c0_76, %c0_77], %213 {strides = array<i32>} : memref<8x128xf32, #tpu.memory_space<vmem>>, vector<8x128xf32>,
    return
  }
}

</mosaic_0001>

<llo_original>
// kernel: pt_model_forward.1
$region0: #{pt_model_forward.1}
  #allocation0 [shape = 'u32[]', space=smem, size = 0x4, offset = 0x4, fixed_abs, tag = 'smem constant byte address 0x4 - core index']
  #allocation1 [shape = 'u32[144,128]{1,0:T(1,128)}', space=vmem, size = 0x12000, scoped, tag = 'internal scratch']
  %s0 = inlined_call_operand.vmem [shape: f32[24,128], index: 0, kind: input, shape index: {}]
  %s1 = inlined_call_operand.hbm [shape: bf16[616,128], index: 1, kind: input, shape index: {}]
  %s2 = inlined_call_operand.vmem [shape: f32[8,128], index: 2, kind: output, shape index: {}]
  %s3 = sld [smem:[#allocation0]]
  $region22: #{pt_model_forward.1} parent=0
    _
  %s5 = ssub.s32 1, %s3
  %s6 = scalar_select 0, %s5, %s3
  $region1: #{pt_model_forward.1} parent=0
    #allocation2 [shape = 'u8[157696]{0}', space=vmem, size = 0x26800, scoped, tag = 'input window, operand 1, single buffered']
    #allocation3 [shape = 's32[1]{0}', space=sflag, size = 0x4, scoped, tag = 'scoped memory for pt_model_forward.1']
    %7 = vsyncpa [#allocation3], 0
    // Predicated region
    $region2: #{pt_model_forward.1} parent=1 // pred_check
      _
    $region3: #{pt_model_forward.1} parent=1 // pred_check_branch
      %9 = sbr.rel (0) target = $region5
    $region4: #{pt_model_forward.1} parent=1 // pred_region
      _
    $region5: #{pt_model_forward.1} parent=1 // pred_fallthru
      _
    // Predicated region
    $region6: #{pt_model_forward.1} parent=1 // pred_check
      _
    $region7: #{pt_model_forward.1} parent=1 // pred_check_branch
      %11 = sbr.rel (0) target = $region9
    $region8: #{pt_model_forward.1} parent=1 // pred_region
      %s13 = ssub.s32 4928, 4928
      %14 = vsyncadd [#allocation3], %s13
      %s15 = sshll.u32 [#allocation2], 4
      %s16 = int_to_ptr.vmem [resolvable:$true] %s15
      %21 = dma.hbm_to_vmem [thread:$0]  %s1, 4928, %s16, [#allocation3], 64, 64, 4
    $region9: #{pt_model_forward.1} parent=1 // pred_fallthru
      _
    // Predicated region
    $region10: #{pt_model_forward.1} parent=1 // pred_check
      _
    $region11: #{pt_model_forward.1} parent=1 // pred_check_branch
      %23 = sbr.rel (0) target = $region13
    $region12: #{pt_model_forward.1} parent=1 // pred_region
      %24 = dma.done [#allocation3], 4928
    $region13: #{pt_model_forward.1} parent=1 // pred_fallthru
      _
    %v26 = vld [vmem:[%s0] sm:$0xff]
    %v27 = vld [vmem:[%s0 + $0x8] sm:$0xff]
    %v28 = vcvt.f32.s32.to.zero.pseudo %v26
    %v29 = vcvt.f32.s32.to.zero.pseudo %v27
    %v30 = vlaneseq
    %v31 = vand.u32 %v30, 127
    %32 = vset.pattern.permute.xlu0 0
    %33 = vperm.xlu0 %32, %v28
    %v34 = vpop.permute.xlu0 %33
    %35 = vset.pattern.permute.xlu0 0
    %36 = vperm.xlu0 %35, %v29
    %v37 = vpop.permute.xlu0 %36
    %vm38 = vcmp.eq.s32.totalorder %v34, %v31
    %vm39 = vcmp.eq.s32.totalorder %v37, %v31
    %v40 = vld [vmem:[#allocation2] sm:$0xf]
    %v41 = vld [vmem:[#allocation2 + $0x4] sm:$0xf]
    %v42 = vsel %vm38, 1, 0
    %v43 = vsel %vm39, 1, 0
    %v44 = vcvt.s32.f32 %v42
    %v45 = vcvt.s32.f32 %v43
    %v46 = vpack.c.bf16 %v45, %v44
    %v47 = vld [vmem:[#allocation2 + $0x8] sm:$0xf]
    %v48 = vld [vmem:[#allocation2 + $0xc] sm:$0xf]
    %v49 = vunpack.c.l.bf16 %v47
    %v50 = vunpack.c.l.bf16 %v48
    %v53 = vunpack.c.l.b16 %v40
    %v54 = vunpack.c.l.b16 %v41
    %v55 = vpack.c.b16 %v54, %v53
    %vm57 = vcmask 130048
    %v59 = vsel %vm57, %v46, 0
    %61 = vmatprep.subr.bf16.mxu0 0
    %62 = vmatpush1.bf16.msra.mxu0 0
    %63 = vmatprep.subr.bf16.mxu0 0
    %64 = vmatpush1.bf16.msra.mxu0 0
    %65 = vmatprep.subr.bf16.mxu0 0
    %66 = vmatpush1.bf16.msra.mxu0 0
    %67 = vmatprep.subr.bf16.mxu0 0
    %68 = vmatpush1.bf16.msra.mxu0 0
    %69 = vmatprep.subr.bf16.mxu0 0
    %70 = vmatpush1.bf16.msra.mxu0 0
    %71 = vmatprep.subr.bf16.mxu0 0
    %72 = vmatpush1.bf16.msra.mxu0 0
    %73 = vmatprep.subr.bf16.mxu0 0
    %74 = vmatpush1.bf16.msra.mxu0 0
    %75 = vmatprep.subr.bf16.mxu0 0
    %76 = vmatpush1.bf16.msra.mxu0 %v55
    %77 = vmatprep.subr.bf16.mxu0 0
    %78 = vmatpush2.bf16.msra.mxu0 0
    %79 = vmatprep.subr.bf16.mxu0 0
    %80 = vmatpush2.bf16.msra.mxu0 0
    %81 = vmatprep.subr.bf16.mxu0 0
    %82 = vmatpush2.bf16.msra.mxu0 0
    %83 = vmatprep.subr.bf16.mxu0 0
    %84 = vmatpush2.bf16.msra.mxu0 0
    %85 = vmatprep.subr.bf16.mxu0 0
    %86 = vmatpush2.bf16.msra.mxu0 0
    %87 = vmatprep.subr.bf16.mxu0 0
    %88 = vmatpush2.bf16.msra.mxu0 0
    %89 = vmatprep.subr.bf16.mxu0 0
    %90 = vmatpush2.bf16.msra.mxu0 0
    %91 = vmatprep.subr.bf16.mxu0 0
    %92 = vmatpush2.bf16.msra.mxu0 0
    %93 = vmatprep.mubr.bf16.mxu0 0
    %94 = vmatmul.mubr.bf16.gmra.mxu0 %v59
    %v95 = vpop.f32.mrf.mxu0
    %v96 = vadd.f32 %v49, %v95
    %v97 = vpop.f32.mrf.mxu0
    %v98 = vpop.f32.mrf.mxu0
    %v99 = vadd.f32 %v50, %v98
    %v100 = vpop.f32.mrf.mxu0
    %101 = vdwg.mxu0
    %v102 = vld [vmem:[#allocation2 + $0x10] sm:$0xf]
    %v103 = vld [vmem:[#allocation2 + $0x14] sm:$0xf]
    %v104 = vld [vmem:[#allocation2 + $0x18] sm:$0xf]
    %v105 = vld [vmem:[#allocation2 + $0x1c] sm:$0xf]
    %v106 = vpack.c.bf16 %v99, %v96
    %v107 = vld [vmem:[#allocation2 + $0xb0] sm:$0xf]
    %v108 = vld [vmem:[#allocation2 + $0xb4] sm:$0xf]
    %v109 = vunpack.c.l.bf16 %v107
    %v110 = vunpack.c.l.bf16 %v108
    %v115 = vunpack.c.l.b16 %v102
    %v116 = vunpack.c.l.b16 %v103
    %v117 = vunpack.c.l.b16 %v104
    %v118 = vunpack.c.l.b16 %v105
    %v119 = vpack.c.b16 %v116, %v115
    %v120 = vpack.c.b16 %v118, %v117
    %vm121 = vcmask 261120
    %v123 = vsel %vm121, %v106, 0
    %v126 = vsel %vm121, %v119, 0
    %v129 = vsel %vm121, %v120, 0
    %131 = vmatprep.subr.bf16.mxu0 0
    %132 = vmatpush1.bf16.xpose.msra.mxu0 0
    %133 = vmatprep.subr.bf16.mxu0 0
    %134 = vmatpush1.bf16.xpose.msra.mxu0 0
    %135 = vmatprep.subr.bf16.mxu0 0
    %136 = vmatpush1.bf16.xpose.msra.mxu0 0
    %137 = vmatprep.subr.bf16.mxu0 0
    %138 = vmatpush1.bf16.xpose.msra.mxu0 0
    %139 = vmatprep.subr.bf16.mxu0 0
    %140 = vmatpush1.bf16.xpose.msra.mxu0 0
    %141 = vmatprep.subr.bf16.mxu0 0
    %142 = vmatpush1.bf16.xpose.msra.mxu0 0
    %143 = vmatprep.subr.bf16.mxu0 0
    %144 = vmatpush1.bf16.xpose.msra.mxu0 %v129
    %145 = vmatprep.subr.bf16.mxu0 0
    %146 = vmatpush1.bf16.xpose.msra.mxu0 %v126
    %147 = vmatprep.subr.bf16.mxu0 0
    %148 = vmatpush2.bf16.xpose.msra.mxu0 0
    %149 = vmatprep.subr.bf16.mxu0 0
    %150 = vmatpush2.bf16.xpose.msra.mxu0 0
    %151 = vmatprep.subr.bf16.mxu0 0
    %152 = vmatpush2.bf16.xpose.msra.mxu0 0
    %153 = vmatprep.subr.bf16.mxu0 0
    %154 = vmatpush2.bf16.xpose.msra.mxu0 0
    %155 = vmatprep.subr.bf16.mxu0 0
    %156 = vmatpush2.bf16.xpose.msra.mxu0 0
    %157 = vmatprep.subr.bf16.mxu0 0
    %158 = vmatpush2.bf16.xpose.msra.mxu0 0
    %159 = vmatprep.subr.bf16.mxu0 0
    %160 = vmatpush2.bf16.xpose.msra.mxu0 0
    %161 = vmatprep.subr.bf16.mxu0 0
    %162 = vmatpush2.bf16.xpose.msra.mxu0 0
    %163 = vmatprep.mubr.bf16.mxu0 0
    %164 = vmatmul.mubr.bf16.gmra.mxu0 %v123
    %v165 = vpop.f32.mrf.mxu0
    %v166 = vadd.f32 %v109, %v165
    %v167 = vpop.f32.mrf.mxu0
    %v168 = vpop.f32.mrf.mxu0
    %v169 = vadd.f32 %v110, %v168
    %v170 = vpop.f32.mrf.mxu0
    %171 = vdwg.mxu0
    %v172 = vld [vmem:[#allocation2 + $0x20] sm:$0xf]
    %v173 = vld [vmem:[#allocation2 + $0x24] sm:$0xf]
    %v174 = vld [vmem:[#allocation2 + $0x28] sm:$0xf]
    %v175 = vld [vmem:[#allocation2 + $0x2c] sm:$0xf]
    %v176 = vld [vmem:[#allocation2 + $0xb8] sm:$0xf]
    %v177 = vld [vmem:[#allocation2 + $0xbc] sm:$0xf]
    %v178 = vunpack.c.l.bf16 %v176
    %v179 = vunpack.c.l.bf16 %v177
    %v184 = vunpack.c.l.b16 %v172
    %v185 = vunpack.c.l.b16 %v173
    %v186 = vunpack.c.l.b16 %v174
    %v187 = vunpack.c.l.b16 %v175
    %v188 = vpack.c.b16 %v185, %v184
    %v189 = vpack.c.b16 %v187, %v186
    %v191 = vsel %vm121, %v188, 0
    %v194 = vsel %vm121, %v189, 0
    %196 = vmatprep.subr.bf16.mxu0 0
    %197 = vmatpush1.bf16.xpose.msra.mxu0 0
    %198 = vmatprep.subr.bf16.mxu0 0
    %199 = vmatpush1.bf16.xpose.msra.mxu0 0
    %200 = vmatprep.subr.bf16.mxu0 0
    %201 = vmatpush1.bf16.xpose.msra.mxu0 0
    %202 = vmatprep.subr.bf16.mxu0 0
    %203 = vmatpush1.bf16.xpose.msra.mxu0 0
    %204 = vmatprep.subr.bf16.mxu0 0
    %205 = vmatpush1.bf16.xpose.msra.mxu0 0
    %206 = vmatprep.subr.bf16.mxu0 0
    %207 = vmatpush1.bf16.xpose.msra.mxu0 0
    %208 = vmatprep.subr.bf16.mxu0 0
    %209 = vmatpush1.bf16.xpose.msra.mxu0 %v194
    %210 = vmatprep.subr.bf16.mxu0 0
    %211 = vmatpush1.bf16.xpose.msra.mxu0 %v191
    %212 = vmatprep.subr.bf16.mxu0 0
    %213 = vmatpush2.bf16.xpose.msra.mxu0 0
    %214 = vmatprep.subr.bf16.mxu0 0
    %215 = vmatpush2.bf16.xpose.msra.mxu0 0
    %216 = vmatprep.subr.bf16.mxu0 0
    %217 = vmatpush2.bf16.xpose.msra.mxu0 0
    %218 = vmatprep.subr.bf16.mxu0 0
    %219 = vmatpush2.bf16.xpose.msra.mxu0 0
    %220 = vmatprep.subr.bf16.mxu0 0
    %221 = vmatpush2.bf16.xpose.msra.mxu0 0
    %222 = vmatprep.subr.bf16.mxu0 0
    %223 = vmatpush2.bf16.xpose.msra.mxu0 0
    %224 = vmatprep.subr.bf16.mxu0 0
    %225 = vmatpush2.bf16.xpose.msra.mxu0 0
    %226 = vmatprep.subr.bf16.mxu0 0
    %227 = vmatpush2.bf16.xpose.msra.mxu0 0
    %228 = vmatprep.mubr.bf16.mxu0 0
    %229 = vmatmul.mubr.bf16.gmra.mxu0 %v123
    %v230 = vpop.f32.mrf.mxu0
    %v231 = vadd.f32 %v178, %v230
    %v232 = vpop.f32.mrf.mxu0
    %v233 = vpop.f32.mrf.mxu0
    %v234 = vadd.f32 %v179, %v233
    %v235 = vpop.f32.mrf.mxu0
    %236 = vdwg.mxu0
    %v237 = vld [vmem:[#allocation2 + $0x30] sm:$0xf]
    %v238 = vld [vmem:[#allocation2 + $0x34] sm:$0xf]
    %v239 = vld [vmem:[#allocation2 + $0x38] sm:$0xf]
    %v240 = vld [vmem:[#allocation2 + $0x3c] sm:$0xf]
    %v241 = vld [vmem:[#allocation2 + $0xc0] sm:$0xf]
    %v242 = vld [vmem:[#allocation2 + $0xc4] sm:$0xf]
    %v243 = vunpack.c.l.bf16 %v241
    %v244 = vunpack.c.l.bf16 %v242
    %v249 = vunpack.c.l.b16 %v237
    %v250 = vunpack.c.l.b16 %v238
    %v251 = vunpack.c.l.b16 %v239
    %v252 = vunpack.c.l.b16 %v240
    %v253 = vpack.c.b16 %v250, %v249
    %v254 = vpack.c.b16 %v252, %v251
    %v256 = vsel %vm121, %v253, 0
    %v259 = vsel %vm121, %v254, 0
    %261 = vmatprep.subr.bf16.mxu0 0
    %262 = vmatpush1.bf16.xpose.msra.mxu0 0
    %263 = vmatprep.subr.bf16.mxu0 0
    %264 = vmatpush1.bf16.xpose.msra.mxu0 0
    %265 = vmatprep.subr.bf16.mxu0 0
    %266 = vmatpush1.bf16.xpose.msra.mxu0 0
    %267 = vmatprep.subr.bf16.mxu0 0
    %268 = vmatpush1.bf16.xpose.msra.mxu0 0
    %269 = vmatprep.subr.bf16.mxu0 0
    %270 = vmatpush1.bf16.xpose.msra.mxu0 0
    %271 = vmatprep.subr.bf16.mxu0 0
    %272 = vmatpush1.bf16.xpose.msra.mxu0 0
    %273 = vmatprep.subr.bf16.mxu0 0
    %274 = vmatpush1.bf16.xpose.msra.mxu0 %v259
    %275 = vmatprep.subr.bf16.mxu0 0
    %276 = vmatpush1.bf16.xpose.msra.mxu0 %v256
    %277 = vmatprep.subr.bf16.mxu0 0
    %278 = vmatpush2.bf16.xpose.msra.mxu0 0
    %279 = vmatprep.subr.bf16.mxu0 0
    %280 = vmatpush2.bf16.xpose.msra.mxu0 0
    %281 = vmatprep.subr.bf16.mxu0 0
    %282 = vmatpush2.bf16.xpose.msra.mxu0 0
    %283 = vmatprep.subr.bf16.mxu0 0
    %284 = vmatpush2.bf16.xpose.msra.mxu0 0
    %285 = vmatprep.subr.bf16.mxu0 0
    %286 = vmatpush2.bf16.xpose.msra.mxu0 0
    %287 = vmatprep.subr.bf16.mxu0 0
    %288 = vmatpush2.bf16.xpose.msra.mxu0 0
    %289 = vmatprep.subr.bf16.mxu0 0
    %290 = vmatpush2.bf16.xpose.msra.mxu0 0
    %291 = vmatprep.subr.bf16.mxu0 0
    %292 = vmatpush2.bf16.xpose.msra.mxu0 0
    %293 = vmatprep.mubr.bf16.mxu0 0
    %294 = vmatmul.mubr.bf16.gmra.mxu0 %v123
    %v295 = vpop.f32.mrf.mxu0
    %v296 = vadd.f32 %v243, %v295
    %v297 = vpop.f32.mrf.mxu0
    %v298 = vpop.f32.mrf.mxu0
    %v299 = vadd.f32 %v244, %v298
    %v300 = vpop.f32.mrf.mxu0
    %301 = vdwg.mxu0
    %v302 = vld [vmem:[#allocation2 + $0x100] sm:$0xf]
    %v303 = vld [vmem:[#allocation2 + $0x104] sm:$0xf]
    %v304 = vunpack.c.l.bf16 %v302
    %v305 = vunpack.c.l.bf16 %v303
    %v306 = vld [vmem:[#allocation2 + $0x108] sm:$0xf]
    %v307 = vld [vmem:[#allocation2 + $0x10c] sm:$0xf]
    %v308 = vpack.c.bf16 %v234, %v231
    %v311 = vunpack.c.l.b16 %v306
    %v312 = vunpack.c.l.b16 %v307
    %v313 = vpack.c.b16 %v312, %v311
    %v315 = vmul.bf16 %v308, %v313
    %v316 = vpack.c.bf16 %v299, %v296
    %v317 = vmul.bf16 %v316, %v313
    %v318 = vpack.c.bf16 %v169, %v166
    %v320 = vsel %vm121, %v318, 0
    %v323 = vsel %vm121, %v315, 0
    %325 = vmatprep.subr.bf16.mxu0 0
    %326 = vmatpush1.bf16.xpose.msra.mxu0 0
    %327 = vmatprep.subr.bf16.mxu0 0
    %328 = vmatpush1.bf16.xpose.msra.mxu0 0
    %329 = vmatprep.subr.bf16.mxu0 0
    %330 = vmatpush1.bf16.xpose.msra.mxu0 0
    %331 = vmatprep.subr.bf16.mxu0 0
    %332 = vmatpush1.bf16.xpose.msra.mxu0 0
    %333 = vmatprep.subr.bf16.mxu0 0
    %334 = vmatpush1.bf16.xpose.msra.mxu0 0
    %335 = vmatprep.subr.bf16.mxu0 0
    %336 = vmatpush1.bf16.xpose.msra.mxu0 0
    %337 = vmatprep.subr.bf16.mxu0 0
    %338 = vmatpush1.bf16.xpose.msra.mxu0 0
    %339 = vmatprep.subr.bf16.mxu0 0
    %340 = vmatpush1.bf16.xpose.msra.mxu0 %v323
    %341 = vmatprep.subr.bf16.mxu0 0
    %342 = vmatpush2.bf16.xpose.msra.mxu0 0
    %343 = vmatprep.subr.bf16.mxu0 0
    %344 = vmatpush2.bf16.xpose.msra.mxu0 0
    %345 = vmatprep.subr.bf16.mxu0 0
    %346 = vmatpush2.bf16.xpose.msra.mxu0 0
    %347 = vmatprep.subr.bf16.mxu0 0
    %348 = vmatpush2.bf16.xpose.msra.mxu0 0
    %349 = vmatprep.subr.bf16.mxu0 0
    %350 = vmatpush2.bf16.xpose.msra.mxu0 0
    %351 = vmatprep.subr.bf16.mxu0 0
    %352 = vmatpush2.bf16.xpose.msra.mxu0 0
    %353 = vmatprep.subr.bf16.mxu0 0
    %354 = vmatpush2.bf16.xpose.msra.mxu0 0
    %355 = vmatprep.subr.bf16.mxu0 0
    %356 = vmatpush2.bf16.xpose.msra.mxu0 0
    %357 = vmatprep.mubr.bf16.mxu0 0
    %358 = vmatmul.mubr.bf16.gmra.mxu0 %v320
    %v359 = vpop.f32.mrf.mxu0
    %v360 = vadd.f32 %v304, %v359
    %v361 = vpop.f32.mrf.mxu0
    %v362 = vpop.f32.mrf.mxu0
    %v363 = vadd.f32 %v305, %v362
    %v364 = vpop.f32.mrf.mxu0
    %365 = vdwg.mxu0
    %v366 = vsel %vm57, %v360, -inf
    %367 = vmax.xlane.f32.xlu0 %v366
    %v368 = vpop.xlane.xlu0 %367
    %v369 = vsel %vm57, %v363, -inf
    %370 = vmax.xlane.f32.xlu0 %v369
    %v371 = vpop.xlane.xlu0 %370
    %v372 = vsub.f32 %v360, %v368
    %v373 = vsub.f32 %v363, %v371
    %v374 = vmul.f32 %v372, 1.442695
    %v375 = vpow.pop %v374
    %v376 = vmul.f32 %v373, 1.442695
    %v377 = vpow.pop %v376
    %v378 = vsel %vm57, %v375, 0.0
    %379 = vadd.xlane.f32.xlu0 %v378
    %v380 = vpop.xlane.xlu0 %379
    %v381 = vsel %vm57, %v377, 0.0
    %382 = vadd.xlane.f32.xlu0 %v381
    %v383 = vpop.xlane.xlu0 %382
    %v384 = vrcp.pop %v380
    %v385 = vrcp.pop %v383
    %v386 = vmul.f32 %v375, %v384
    %v387 = vmul.f32 %v377, %v385
    %v388 = vpack.c.bf16 %v387, %v386
    %v389 = vld [vmem:[#allocation2 + $0x110] sm:$0xf]
    %v390 = vld [vmem:[#allocation2 + $0x114] sm:$0xf]
    %v393 = vunpack.c.l.b16 %v389
    %v394 = vunpack.c.l.b16 %v390
    %v395 = vpack.c.b16 %v394, %v393
    %v397 = vmul.bf16 %v308, %v395
    %v398 = vmul.bf16 %v316, %v395
    %v400 = vsel %vm121, %v397, 0
    %402 = vmatprep.subr.bf16.mxu0 0
    %403 = vmatpush1.bf16.xpose.msra.mxu0 0
    %404 = vmatprep.subr.bf16.mxu0 0
    %405 = vmatpush1.bf16.xpose.msra.mxu0 0
    %406 = vmatprep.subr.bf16.mxu0 0
    %407 = vmatpush1.bf16.xpose.msra.mxu0 0
    %408 = vmatprep.subr.bf16.mxu0 0
    %409 = vmatpush1.bf16.xpose.msra.mxu0 0
    %410 = vmatprep.subr.bf16.mxu0 0
    %411 = vmatpush1.bf16.xpose.msra.mxu0 0
    %412 = vmatprep.subr.bf16.mxu0 0
    %413 = vmatpush1.bf16.xpose.msra.mxu0 0
    %414 = vmatprep.subr.bf16.mxu0 0
    %415 = vmatpush1.bf16.xpose.msra.mxu0 0
    %416 = vmatprep.subr.bf16.mxu0 0
    %417 = vmatpush1.bf16.xpose.msra.mxu0 %v400
    %418 = vmatprep.subr.bf16.mxu0 0
    %419 = vmatpush2.bf16.xpose.msra.mxu0 0
    %420 = vmatprep.subr.bf16.mxu0 0
    %421 = vmatpush2.bf16.xpose.msra.mxu0 0
    %422 = vmatprep.subr.bf16.mxu0 0
    %423 = vmatpush2.bf16.xpose.msra.mxu0 0
    %424 = vmatprep.subr.bf16.mxu0 0
    %425 = vmatpush2.bf16.xpose.msra.mxu0 0
    %426 = vmatprep.subr.bf16.mxu0 0
    %427 = vmatpush2.bf16.xpose.msra.mxu0 0
    %428 = vmatprep.subr.bf16.mxu0 0
    %429 = vmatpush2.bf16.xpose.msra.mxu0 0
    %430 = vmatprep.subr.bf16.mxu0 0
    %431 = vmatpush2.bf16.xpose.msra.mxu0 0
    %432 = vmatprep.subr.bf16.mxu0 0
    %433 = vmatpush2.bf16.xpose.msra.mxu0 0
    %434 = vmatprep.mubr.bf16.mxu0 0
    %435 = vmatmul.mubr.bf16.gmra.mxu0 %v320
    %v436 = vpop.f32.mrf.mxu0
    %v437 = vadd.f32 %v304, %v436
    %v438 = vpop.f32.mrf.mxu0
    %v439 = vpop.f32.mrf.mxu0
    %v440 = vadd.f32 %v305, %v439
    %v441 = vpop.f32.mrf.mxu0
    %442 = vdwg.mxu0
    %v443 = vsel %vm57, %v437, -inf
    %444 = vmax.xlane.f32.xlu0 %v443
    %v445 = vpop.xlane.xlu0 %444
    %v446 = vsel %vm57, %v440, -inf
    %447 = vmax.xlane.f32.xlu0 %v446
    %v448 = vpop.xlane.xlu0 %447
    %v449 = vsub.f32 %v437, %v445
    %v450 = vsub.f32 %v440, %v448
    %v451 = vmul.f32 %v449, 1.442695
    %v452 = vpow.pop %v451
    %v453 = vmul.f32 %v450, 1.442695
    %v454 = vpow.pop %v453
    %v455 = vsel %vm57, %v452, 0.0
    %456 = vadd.xlane.f32.xlu0 %v455
    %v457 = vpop.xlane.xlu0 %456
    %v458 = vsel %vm57, %v454, 0.0
    %459 = vadd.xlane.f32.xlu0 %v458
    %v460 = vpop.xlane.xlu0 %459
    %v461 = vrcp.pop %v457
    %v462 = vrcp.pop %v460
    %v463 = vmul.f32 %v452, %v461
    %v464 = vmul.f32 %v454, %v462
    %v465 = vpack.c.bf16 %v464, %v463
    %v467 = vsel %vm57, %v465, 0
    %469 = vmatprep.subr.bf16.mxu0 0
    %470 = vmatpush1.bf16.msra.mxu0 0
    %471 = vmatprep.subr.bf16.mxu0 0
    %472 = vmatpush1.bf16.msra.mxu0 0
    %473 = vmatprep.subr.bf16.mxu0 0
    %474 = vmatpush1.bf16.msra.mxu0 0
    %475 = vmatprep.subr.bf16.mxu0 0
    %476 = vmatpush1.bf16.msra.mxu0 0
    %477 = vmatprep.subr.bf16.mxu0 0
    %478 = vmatpush1.bf16.msra.mxu0 0
    %479 = vmatprep.subr.bf16.mxu0 0
    %480 = vmatpush1.bf16.msra.mxu0 0
    %481 = vmatprep.subr.bf16.mxu0 0
    %482 = vmatpush1.bf16.msra.mxu0 0
    %483 = vmatprep.subr.bf16.mxu0 0
    %484 = vmatpush1.bf16.msra.mxu0 %v398
    %485 = vmatprep.subr.bf16.mxu0 0
    %486 = vmatpush2.bf16.msra.mxu0 0
    %487 = vmatprep.subr.bf16.mxu0 0
    %488 = vmatpush2.bf16.msra.mxu0 0
    %489 = vmatprep.subr.bf16.mxu0 0
    %490 = vmatpush2.bf16.msra.mxu0 0
    %491 = vmatprep.subr.bf16.mxu0 0
    %492 = vmatpush2.bf16.msra.mxu0 0
    %493 = vmatprep.subr.bf16.mxu0 0
    %494 = vmatpush2.bf16.msra.mxu0 0
    %495 = vmatprep.subr.bf16.mxu0 0
    %496 = vmatpush2.bf16.msra.mxu0 0
    %497 = vmatprep.subr.bf16.mxu0 0
    %498 = vmatpush2.bf16.msra.mxu0 0
    %499 = vmatprep.subr.bf16.mxu0 0
    %500 = vmatpush2.bf16.msra.mxu0 0
    %501 = vmatprep.mubr.bf16.mxu0 0
    %502 = vmatmul.mubr.bf16.gmra.mxu0 %v467
    %v503 = vpop.f32.mrf.mxu0
    %v504 = vadd.f32 0.0, %v503
    %v505 = vpop.f32.mrf.mxu0
    %v506 = vpop.f32.mrf.mxu0
    %v507 = vadd.f32 0.0, %v506
    %v508 = vpop.f32.mrf.mxu0
    %509 = vdwg.mxu0
    %v511 = vsel %vm57, %v388, 0
    %513 = vmatprep.subr.bf16.mxu0 0
    %514 = vmatpush1.bf16.msra.mxu0 0
    %515 = vmatprep.subr.bf16.mxu0 0
    %516 = vmatpush1.bf16.msra.mxu0 0
    %517 = vmatprep.subr.bf16.mxu0 0
    %518 = vmatpush1.bf16.msra.mxu0 0
    %519 = vmatprep.subr.bf16.mxu0 0
    %520 = vmatpush1.bf16.msra.mxu0 0
    %521 = vmatprep.subr.bf16.mxu0 0
    %522 = vmatpush1.bf16.msra.mxu0 0
    %523 = vmatprep.subr.bf16.mxu0 0
    %524 = vmatpush1.bf16.msra.mxu0 0
    %525 = vmatprep.subr.bf16.mxu0 0
    %526 = vmatpush1.bf16.msra.mxu0 0
    %527 = vmatprep.subr.bf16.mxu0 0
    %528 = vmatpush1.bf16.msra.mxu0 %v317
    %529 = vmatprep.subr.bf16.mxu0 0
    %530 = vmatpush2.bf16.msra.mxu0 0
    %531 = vmatprep.subr.bf16.mxu0 0
    %532 = vmatpush2.bf16.msra.mxu0 0
    %533 = vmatprep.subr.bf16.mxu0 0
    %534 = vmatpush2.bf16.msra.mxu0 0
    %535 = vmatprep.subr.bf16.mxu0 0
    %536 = vmatpush2.bf16.msra.mxu0 0
    %537 = vmatprep.subr.bf16.mxu0 0
    %538 = vmatpush2.bf16.msra.mxu0 0
    %539 = vmatprep.subr.bf16.mxu0 0
    %540 = vmatpush2.bf16.msra.mxu0 0
    %541 = vmatprep.subr.bf16.mxu0 0
    %542 = vmatpush2.bf16.msra.mxu0 0
    %543 = vmatprep.subr.bf16.mxu0 0
    %544 = vmatpush2.bf16.msra.mxu0 0
    %545 = vmatprep.mubr.bf16.mxu0 0
    %546 = vmatmul.mubr.bf16.gmra.mxu0 %v511
    %v547 = vpop.f32.mrf.mxu0
    %v548 = vadd.f32 %v504, %v547
    %v549 = vpop.f32.mrf.mxu0
    %v550 = vpop.f32.mrf.mxu0
    %v551 = vadd.f32 %v507, %v550
    %v552 = vpop.f32.mrf.mxu0
    %553 = vdwg.mxu0
    %v554 = vld [vmem:[#allocation2 + $0x118] sm:$0xf]
    %v555 = vld [vmem:[#allocation2 + $0x11c] sm:$0xf]
    %v558 = vunpack.c.l.b16 %v554
    %v559 = vunpack.c.l.b16 %v555
    %v560 = vpack.c.b16 %v559, %v558
    %v562 = vmul.bf16 %v308, %v560
    %v563 = vmul.bf16 %v316, %v560
    %v565 = vsel %vm121, %v562, 0
    %567 = vmatprep.subr.bf16.mxu0 0
    %568 = vmatpush1.bf16.xpose.msra.mxu0 0
    %569 = vmatprep.subr.bf16.mxu0 0
    %570 = vmatpush1.bf16.xpose.msra.mxu0 0
    %571 = vmatprep.subr.bf16.mxu0 0
    %572 = vmatpush1.bf16.xpose.msra.mxu0 0
    %573 = vmatprep.subr.bf16.mxu0 0
    %574 = vmatpush1.bf16.xpose.msra.mxu0 0
    %575 = vmatprep.subr.bf16.mxu0 0
    %576 = vmatpush1.bf16.xpose.msra.mxu0 0
    %577 = vmatprep.subr.bf16.mxu0 0
    %578 = vmatpush1.bf16.xpose.msra.mxu0 0
    %579 = vmatprep.subr.bf16.mxu0 0
    %580 = vmatpush1.bf16.xpose.msra.mxu0 0
    %581 = vmatprep.subr.bf16.mxu0 0
    %582 = vmatpush1.bf16.xpose.msra.mxu0 %v565
    %583 = vmatprep.subr.bf16.mxu0 0
    %584 = vmatpush2.bf16.xpose.msra.mxu0 0
    %585 = vmatprep.subr.bf16.mxu0 0
    %586 = vmatpush2.bf16.xpose.msra.mxu0 0
    %587 = vmatprep.subr.bf16.mxu0 0
    %588 = vmatpush2.bf16.xpose.msra.mxu0 0
    %589 = vmatprep.subr.bf16.mxu0 0
    %590 = vmatpush2.bf16.xpose.msra.mxu0 0
    %591 = vmatprep.subr.bf16.mxu0 0
    %592 = vmatpush2.bf16.xpose.msra.mxu0 0
    %593 = vmatprep.subr.bf16.mxu0 0
    %594 = vmatpush2.bf16.xpose.msra.mxu0 0
    %595 = vmatprep.subr.bf16.mxu0 0
    %596 = vmatpush2.bf16.xpose.msra.mxu0 0
    %597 = vmatprep.subr.bf16.mxu0 0
    %598 = vmatpush2.bf16.xpose.msra.mxu0 0
    %599 = vmatprep.mubr.bf16.mxu0 0
    %600 = vmatmul.mubr.bf16.gmra.mxu0 %v320
    %v601 = vpop.f32.mrf.mxu0
    %v602 = vadd.f32 %v304, %v601
    %v603 = vpop.f32.mrf.mxu0
    %v604 = vpop.f32.mrf.mxu0
    %v605 = vadd.f32 %v305, %v604
    %v606 = vpop.f32.mrf.mxu0
    %607 = vdwg.mxu0
    %v608 = vsel %vm57, %v602, -inf
    %609 = vmax.xlane.f32.xlu0 %v608
    %v610 = vpop.xlane.xlu0 %609
    %v611 = vsel %vm57, %v605, -inf
    %612 = vmax.xlane.f32.xlu0 %v611
    %v613 = vpop.xlane.xlu0 %612
    %v614 = vsub.f32 %v602, %v610
    %v615 = vsub.f32 %v605, %v613
    %v616 = vmul.f32 %v614, 1.442695
    %v617 = vpow.pop %v616
    %v618 = vmul.f32 %v615, 1.442695
    %v619 = vpow.pop %v618
    %v620 = vsel %vm57, %v617, 0.0
    %621 = vadd.xlane.f32.xlu0 %v620
    %v622 = vpop.xlane.xlu0 %621
    %v623 = vsel %vm57, %v619, 0.0
    %624 = vadd.xlane.f32.xlu0 %v623
    %v625 = vpop.xlane.xlu0 %624
    %v626 = vrcp.pop %v622
    %v627 = vrcp.pop %v625
    %v628 = vmul.f32 %v617, %v626
    %v629 = vmul.f32 %v619, %v627
    %v630 = vpack.c.bf16 %v629, %v628
    %v632 = vsel %vm57, %v630, 0
    %634 = vmatprep.subr.bf16.mxu0 0
    %635 = vmatpush1.bf16.msra.mxu0 0
    %636 = vmatprep.subr.bf16.mxu0 0
    %637 = vmatpush1.bf16.msra.mxu0 0
    %638 = vmatprep.subr.bf16.mxu0 0
    %639 = vmatpush1.bf16.msra.mxu0 0
    %640 = vmatprep.subr.bf16.mxu0 0
    %641 = vmatpush1.bf16.msra.mxu0 0
    %642 = vmatprep.subr.bf16.mxu0 0
    %643 = vmatpush1.bf16.msra.mxu0 0
    %644 = vmatprep.subr.bf16.mxu0 0
    %645 = vmatpush1.bf16.msra.mxu0 0
    %646 = vmatprep.subr.bf16.mxu0 0
    %647 = vmatpush1.bf16.msra.mxu0 0
    %648 = vmatprep.subr.bf16.mxu0 0
    %649 = vmatpush1.bf16.msra.mxu0 %v563
    %650 = vmatprep.subr.bf16.mxu0 0
    %651 = vmatpush2.bf16.msra.mxu0 0
    %652 = vmatprep.subr.bf16.mxu0 0
    %653 = vmatpush2.bf16.msra.mxu0 0
    %654 = vmatprep.subr.bf16.mxu0 0
    %655 = vmatpush2.bf16.msra.mxu0 0
    %656 = vmatprep.subr.bf16.mxu0 0
    %657 = vmatpush2.bf16.msra.mxu0 0
    %658 = vmatprep.subr.bf16.mxu0 0
    %659 = vmatpush2.bf16.msra.mxu0 0
    %660 = vmatprep.subr.bf16.mxu0 0
    %661 = vmatpush2.bf16.msra.mxu0 0
    %662 = vmatprep.subr.bf16.mxu0 0
    %663 = vmatpush2.bf16.msra.mxu0 0
    %664 = vmatprep.subr.bf16.mxu0 0
    %665 = vmatpush2.bf16.msra.mxu0 0
    %666 = vmatprep.mubr.bf16.mxu0 0
    %667 = vmatmul.mubr.bf16.gmra.mxu0 %v632
    %v668 = vpop.f32.mrf.mxu0
    %v669 = vadd.f32 0.0, %v668
    %v670 = vpop.f32.mrf.mxu0
    %v671 = vpop.f32.mrf.mxu0
    %v672 = vadd.f32 0.0, %v671
    %v673 = vpop.f32.mrf.mxu0
    %674 = vdwg.mxu0
    %v675 = vadd.f32 %v548, %v669
    %v676 = vadd.f32 %v551, %v672
    %v677 = vld [vmem:[#allocation2 + $0x120] sm:$0xf]
    %v678 = vld [vmem:[#allocation2 + $0x124] sm:$0xf]
    %v681 = vunpack.c.l.b16 %v677
    %v682 = vunpack.c.l.b16 %v678
    %v683 = vpack.c.b16 %v682, %v681
    %v685 = vmul.bf16 %v308, %v683
    %v686 = vmul.bf16 %v316, %v683
    %v688 = vsel %vm121, %v685, 0
    %690 = vmatprep.subr.bf16.mxu0 0
    %691 = vmatpush1.bf16.xpose.msra.mxu0 0
    %692 = vmatprep.subr.bf16.mxu0 0
    %693 = vmatpush1.bf16.xpose.msra.mxu0 0
    %694 = vmatprep.subr.bf16.mxu0 0
    %695 = vmatpush1.bf16.xpose.msra.mxu0 0
    %696 = vmatprep.subr.bf16.mxu0 0
    %697 = vmatpush1.bf16.xpose.msra.mxu0 0
    %698 = vmatprep.subr.bf16.mxu0 0
    %699 = vmatpush1.bf16.xpose.msra.mxu0 0
    %700 = vmatprep.subr.bf16.mxu0 0
    %701 = vmatpush1.bf16.xpose.msra.mxu0 0
    %702 = vmatprep.subr.bf16.mxu0 0
    %703 = vmatpush1.bf16.xpose.msra.mxu0 0
    %704 = vmatprep.subr.bf16.mxu0 0
    %705 = vmatpush1.bf16.xpose.msra.mxu0 %v688
    %706 = vmatprep.subr.bf16.mxu0 0
    %707 = vmatpush2.bf16.xpose.msra.mxu0 0
    %708 = vmatprep.subr.bf16.mxu0 0
    %709 = vmatpush2.bf16.xpose.msra.mxu0 0
    %710 = vmatprep.subr.bf16.mxu0 0
    %711 = vmatpush2.bf16.xpose.msra.mxu0 0
    %712 = vmatprep.subr.bf16.mxu0 0
    %713 = vmatpush2.bf16.xpose.msra.mxu0 0
    %714 = vmatprep.subr.bf16.mxu0 0
    %715 = vmatpush2.bf16.xpose.msra.mxu0 0
    %716 = vmatprep.subr.bf16.mxu0 0
    %717 = vmatpush2.bf16.xpose.msra.mxu0 0
    %718 = vmatprep.subr.bf16.mxu0 0
    %719 = vmatpush2.bf16.xpose.msra.mxu0 0
    %720 = vmatprep.subr.bf16.mxu0 0
    %721 = vmatpush2.bf16.xpose.msra.mxu0 0
    %722 = vmatprep.mubr.bf16.mxu0 0
    %723 = vmatmul.mubr.bf16.gmra.mxu0 %v320
    %v724 = vpop.f32.mrf.mxu0
    %v725 = vadd.f32 %v304, %v724
    %v726 = vpop.f32.mrf.mxu0
    %v727 = vpop.f32.mrf.mxu0
    %v728 = vadd.f32 %v305, %v727
    %v729 = vpop.f32.mrf.mxu0
    %730 = vdwg.mxu0
    %v731 = vsel %vm57, %v725, -inf
    %732 = vmax.xlane.f32.xlu0 %v731
    %v733 = vpop.xlane.xlu0 %732
    %v734 = vsel %vm57, %v728, -inf
    %735 = vmax.xlane.f32.xlu0 %v734
    %v736 = vpop.xlane.xlu0 %735
    %v737 = vsub.f32 %v725, %v733
    %v738 = vsub.f32 %v728, %v736
    %v739 = vmul.f32 %v737, 1.442695
    %v740 = vpow.pop %v739
    %v741 = vmul.f32 %v738, 1.442695
    %v742 = vpow.pop %v741
    %v743 = vsel %vm57, %v740, 0.0
    %744 = vadd.xlane.f32.xlu0 %v743
    %v745 = vpop.xlane.xlu0 %744
    %v746 = vsel %vm57, %v742, 0.0
    %747 = vadd.xlane.f32.xlu0 %v746
    %v748 = vpop.xlane.xlu0 %747
    %v749 = vrcp.pop %v745
    %v750 = vrcp.pop %v748
    %v751 = vmul.f32 %v740, %v749
    %v752 = vmul.f32 %v742, %v750
    %v753 = vpack.c.bf16 %v752, %v751
    %v755 = vsel %vm57, %v753, 0
    %757 = vmatprep.subr.bf16.mxu0 0
    %758 = vmatpush1.bf16.msra.mxu0 0
    %759 = vmatprep.subr.bf16.mxu0 0
    %760 = vmatpush1.bf16.msra.mxu0 0
    %761 = vmatprep.subr.bf16.mxu0 0
    %762 = vmatpush1.bf16.msra.mxu0 0
    %763 = vmatprep.subr.bf16.mxu0 0
    %764 = vmatpush1.bf16.msra.mxu0 0
    %765 = vmatprep.subr.bf16.mxu0 0
    %766 = vmatpush1.bf16.msra.mxu0 0
    %767 = vmatprep.subr.bf16.mxu0 0
    %768 = vmatpush1.bf16.msra.mxu0 0
    %769 = vmatprep.subr.bf16.mxu0 0
    %770 = vmatpush1.bf16.msra.mxu0 0
    %771 = vmatprep.subr.bf16.mxu0 0
    %772 = vmatpush1.bf16.msra.mxu0 %v686
    %773 = vmatprep.subr.bf16.mxu0 0
    %774 = vmatpush2.bf16.msra.mxu0 0
    %775 = vmatprep.subr.bf16.mxu0 0
    %776 = vmatpush2.bf16.msra.mxu0 0
    %777 = vmatprep.subr.bf16.mxu0 0
    %778 = vmatpush2.bf16.msra.mxu0 0
    %779 = vmatprep.subr.bf16.mxu0 0
    %780 = vmatpush2.bf16.msra.mxu0 0
    %781 = vmatprep.subr.bf16.mxu0 0
    %782 = vmatpush2.bf16.msra.mxu0 0
    %783 = vmatprep.subr.bf16.mxu0 0
    %784 = vmatpush2.bf16.msra.mxu0 0
    %785 = vmatprep.subr.bf16.mxu0 0
    %786 = vmatpush2.bf16.msra.mxu0 0
    %787 = vmatprep.subr.bf16.mxu0 0
    %788 = vmatpush2.bf16.msra.mxu0 0
    %789 = vmatprep.mubr.bf16.mxu0 0
    %790 = vmatmul.mubr.bf16.gmra.mxu0 %v755
    %v791 = vpop.f32.mrf.mxu0
    %v792 = vadd.f32 0.0, %v791
    %v793 = vpop.f32.mrf.mxu0
    %v794 = vpop.f32.mrf.mxu0
    %v795 = vadd.f32 0.0, %v794
    %v796 = vpop.f32.mrf.mxu0
    %797 = vdwg.mxu0
    %v798 = vadd.f32 %v675, %v792
    %v799 = vadd.f32 %v676, %v795
    %v800 = vld [vmem:[#allocation2 + $0x40] sm:$0xf]
    %v801 = vld [vmem:[#allocation2 + $0x44] sm:$0xf]
    %v802 = vld [vmem:[#allocation2 + $0x48] sm:$0xf]
    %v803 = vld [vmem:[#allocation2 + $0x4c] sm:$0xf]
    %v804 = vpack.c.bf16 %v799, %v798
    %v805 = vld [vmem:[#allocation2 + $0xc8] sm:$0xf]
    %v806 = vld [vmem:[#allocation2 + $0xcc] sm:$0xf]
    %v807 = vunpack.c.l.bf16 %v805
    %v808 = vunpack.c.l.bf16 %v806
    %v813 = vunpack.c.l.b16 %v800
    %v814 = vunpack.c.l.b16 %v801
    %v815 = vunpack.c.l.b16 %v802
    %v816 = vunpack.c.l.b16 %v803
    %v817 = vpack.c.b16 %v814, %v813
    %v818 = vpack.c.b16 %v816, %v815
    %v820 = vsel %vm121, %v804, 0
    %v823 = vsel %vm121, %v817, 0
    %v826 = vsel %vm121, %v818, 0
    %828 = vmatprep.subr.bf16.mxu0 0
    %829 = vmatpush1.bf16.xpose.msra.mxu0 0
    %830 = vmatprep.subr.bf16.mxu0 0
    %831 = vmatpush1.bf16.xpose.msra.mxu0 0
    %832 = vmatprep.subr.bf16.mxu0 0
    %833 = vmatpush1.bf16.xpose.msra.mxu0 0
    %834 = vmatprep.subr.bf16.mxu0 0
    %835 = vmatpush1.bf16.xpose.msra.mxu0 0
    %836 = vmatprep.subr.bf16.mxu0 0
    %837 = vmatpush1.bf16.xpose.msra.mxu0 0
    %838 = vmatprep.subr.bf16.mxu0 0
    %839 = vmatpush1.bf16.xpose.msra.mxu0 0
    %840 = vmatprep.subr.bf16.mxu0 0
    %841 = vmatpush1.bf16.xpose.msra.mxu0 %v826
    %842 = vmatprep.subr.bf16.mxu0 0
    %843 = vmatpush1.bf16.xpose.msra.mxu0 %v823
    %844 = vmatprep.subr.bf16.mxu0 0
    %845 = vmatpush2.bf16.xpose.msra.mxu0 0
    %846 = vmatprep.subr.bf16.mxu0 0
    %847 = vmatpush2.bf16.xpose.msra.mxu0 0
    %848 = vmatprep.subr.bf16.mxu0 0
    %849 = vmatpush2.bf16.xpose.msra.mxu0 0
    %850 = vmatprep.subr.bf16.mxu0 0
    %851 = vmatpush2.bf16.xpose.msra.mxu0 0
    %852 = vmatprep.subr.bf16.mxu0 0
    %853 = vmatpush2.bf16.xpose.msra.mxu0 0
    %854 = vmatprep.subr.bf16.mxu0 0
    %855 = vmatpush2.bf16.xpose.msra.mxu0 0
    %856 = vmatprep.subr.bf16.mxu0 0
    %857 = vmatpush2.bf16.xpose.msra.mxu0 0
    %858 = vmatprep.subr.bf16.mxu0 0
    %859 = vmatpush2.bf16.xpose.msra.mxu0 0
    %860 = vmatprep.mubr.bf16.mxu0 0
    %861 = vmatmul.mubr.bf16.gmra.mxu0 %v820
    %v862 = vpop.f32.mrf.mxu0
    %v863 = vadd.f32 %v807, %v862
    %v864 = vpop.f32.mrf.mxu0
    %v865 = vpop.f32.mrf.mxu0
    %v866 = vadd.f32 %v808, %v865
    %v867 = vpop.f32.mrf.mxu0
    %868 = vdwg.mxu0
    %v869 = vadd.f32 %v96, %v863
    %v870 = vadd.f32 %v99, %v866
    %v871 = vld [vmem:[#allocation2 + $0xd0] sm:$0xf]
    %v872 = vld [vmem:[#allocation2 + $0xd4] sm:$0xf]
    %v873 = vunpack.c.l.bf16 %v871
    %v874 = vunpack.c.l.bf16 %v872
    %v875 = vld [vmem:[#allocation2 + $0xd8] sm:$0xf]
    %v876 = vld [vmem:[#allocation2 + $0xdc] sm:$0xf]
    %v877 = vunpack.c.l.bf16 %v875
    %v878 = vunpack.c.l.bf16 %v876
    %v879 = vsel %vm121, %v869, 0.0
    %880 = vadd.xlane.f32.xlu0 %v879
    %v881 = vpop.xlane.xlu0 %880
    %v882 = vsel %vm121, %v870, 0.0
    %883 = vadd.xlane.f32.xlu0 %v882
    %v884 = vpop.xlane.xlu0 %883
    %v885 = vrcp.pop 32.0
    %v886 = vmul.f32 %v881, %v885
    %v887 = vmul.f32 %v884, %v885
    %v888 = vsub.f32 %v869, %v886
    %v889 = vsub.f32 %v870, %v887
    %v890 = vmul.f32 %v888, %v888
    %v891 = vmul.f32 %v889, %v889
    %v892 = vsel %vm121, %v890, 0.0
    %893 = vadd.xlane.f32.xlu0 %v892
    %v894 = vpop.xlane.xlu0 %893
    %v895 = vsel %vm121, %v891, 0.0
    %896 = vadd.xlane.f32.xlu0 %v895
    %v897 = vpop.xlane.xlu0 %896
    %v898 = vmul.f32 %v894, %v885
    %v899 = vmul.f32 %v897, %v885
    %v900 = vadd.f32 %v898, 1e-06
    %v901 = vadd.f32 %v899, 1e-06
    %v902 = vrsqrt.pop %v900
    %v903 = vrsqrt.pop %v901
    %v904 = vmul.f32 %v888, %v902
    %v905 = vmul.f32 %v889, %v903
    %v906 = vmul.f32 %v904, %v873
    %v907 = vmul.f32 %v905, %v874
    %v908 = vadd.f32 %v906, %v877
    %v909 = vadd.f32 %v907, %v878
    %v910 = vld [vmem:[#allocation2 + $0x50] sm:$0xf]
    %v911 = vld [vmem:[#allocation2 + $0x54] sm:$0xf]
    %v912 = vld [vmem:[#allocation2 + $0x58] sm:$0xf]
    %v913 = vld [vmem:[#allocation2 + $0x5c] sm:$0xf]
    %v914 = vld [vmem:[#allocation2 + $0x60] sm:$0xf]
    %v915 = vld [vmem:[#allocation2 + $0x64] sm:$0xf]
    %v916 = vld [vmem:[#allocation2 + $0x68] sm:$0xf]
    %v917 = vld [vmem:[#allocation2 + $0x6c] sm:$0xf]
    %v918 = vpack.c.bf16 %v909, %v908
    %v919 = vld [vmem:[#allocation2 + $0xe0] sm:$0xf]
    %v920 = vld [vmem:[#allocation2 + $0xe4] sm:$0xf]
    %v921 = vunpack.c.l.bf16 %v919
    %v922 = vunpack.c.l.bf16 %v920
    %v931 = vunpack.c.l.b16 %v910
    %v932 = vunpack.c.l.b16 %v911
    %v933 = vunpack.c.l.b16 %v912
    %v934 = vunpack.c.l.b16 %v913
    %v935 = vunpack.c.l.b16 %v914
    %v936 = vunpack.c.l.b16 %v915
    %v937 = vunpack.c.l.b16 %v916
    %v938 = vunpack.c.l.b16 %v917
    %v939 = vpack.c.b16 %v932, %v931
    %v940 = vpack.c.b16 %v934, %v933
    %v941 = vpack.c.b16 %v936, %v935
    %v942 = vpack.c.b16 %v938, %v937
    %v944 = vsel %vm121, %v918, 0
    %v947 = vsel %vm121, %v939, 0
    %v950 = vsel %vm121, %v940, 0
    %v953 = vsel %vm121, %v941, 0
    %v956 = vsel %vm121, %v942, 0
    %958 = vmatprep.subr.bf16.mxu0 0
    %959 = vmatpush1.bf16.xpose.msra.mxu0 0
    %960 = vmatprep.subr.bf16.mxu0 0
    %961 = vmatpush1.bf16.xpose.msra.mxu0 0
    %962 = vmatprep.subr.bf16.mxu0 0
    %963 = vmatpush1.bf16.xpose.msra.mxu0 0
    %964 = vmatprep.subr.bf16.mxu0 0
    %965 = vmatpush1.bf16.xpose.msra.mxu0 0
    %966 = vmatprep.subr.bf16.mxu0 0
    %967 = vmatpush1.bf16.xpose.msra.mxu0 %v956
    %968 = vmatprep.subr.bf16.mxu0 0
    %969 = vmatpush1.bf16.xpose.msra.mxu0 %v953
    %970 = vmatprep.subr.bf16.mxu0 0
    %971 = vmatpush1.bf16.xpose.msra.mxu0 %v950
    %972 = vmatprep.subr.bf16.mxu0 0
    %973 = vmatpush1.bf16.xpose.msra.mxu0 %v947
    %974 = vmatprep.subr.bf16.mxu0 0
    %975 = vmatpush2.bf16.xpose.msra.mxu0 0
    %976 = vmatprep.subr.bf16.mxu0 0
    %977 = vmatpush2.bf16.xpose.msra.mxu0 0
    %978 = vmatprep.subr.bf16.mxu0 0
    %979 = vmatpush2.bf16.xpose.msra.mxu0 0
    %980 = vmatprep.subr.bf16.mxu0 0
    %981 = vmatpush2.bf16.xpose.msra.mxu0 0
    %982 = vmatprep.subr.bf16.mxu0 0
    %983 = vmatpush2.bf16.xpose.msra.mxu0 0
    %984 = vmatprep.subr.bf16.mxu0 0
    %985 = vmatpush2.bf16.xpose.msra.mxu0 0
    %986 = vmatprep.subr.bf16.mxu0 0
    %987 = vmatpush2.bf16.xpose.msra.mxu0 0
    %988 = vmatprep.subr.bf16.mxu0 0
    %989 = vmatpush2.bf16.xpose.msra.mxu0 0
    %990 = vmatprep.mubr.bf16.mxu0 0
    %991 = vmatmul.mubr.bf16.gmra.mxu0 %v944
    %v992 = vpop.f32.mrf.mxu0
    %v993 = vadd.f32 %v921, %v992
    %v994 = vpop.f32.mrf.mxu0
    %v995 = vpop.f32.mrf.mxu0
    %v996 = vadd.f32 %v922, %v995
    %v997 = vpop.f32.mrf.mxu0
    %998 = vdwg.mxu0
    %v999 = vmax.f32 %v993, 0.0
    %v1000 = vmax.f32 %v996, 0.0
    %v1001 = vld [vmem:[#allocation2 + $0x70] sm:$0xf]
    %v1002 = vld [vmem:[#allocation2 + $0x74] sm:$0xf]
    %v1003 = vld [vmem:[#allocation2 + $0x78] sm:$0xf]
    %v1004 = vld [vmem:[#allocation2 + $0x7c] sm:$0xf]
    %v1005 = vld [vmem:[#allocation2 + $0x80] sm:$0xf]
    %v1006 = vld [vmem:[#allocation2 + $0x84] sm:$0xf]
    %v1007 = vld [vmem:[#allocation2 + $0x88] sm:$0xf]
    %v1008 = vld [vmem:[#allocation2 + $0x8c] sm:$0xf]
    %v1009 = vpack.c.bf16 %v1000, %v999
    %v1010 = vld [vmem:[#allocation2 + $0xe8] sm:$0xf]
    %v1011 = vld [vmem:[#allocation2 + $0xec] sm:$0xf]
    %v1012 = vunpack.c.l.bf16 %v1010
    %v1013 = vunpack.c.l.bf16 %v1011
    %v1022 = vunpack.c.l.b16 %v1001
    %v1023 = vunpack.c.l.b16 %v1002
    %v1024 = vunpack.c.l.b16 %v1003
    %v1025 = vunpack.c.l.b16 %v1004
    %v1026 = vunpack.c.l.b16 %v1005
    %v1027 = vunpack.c.l.b16 %v1006
    %v1028 = vunpack.c.l.b16 %v1007
    %v1029 = vunpack.c.l.b16 %v1008
    %v1030 = vpack.c.b16 %v1023, %v1022
    %v1031 = vpack.c.b16 %v1025, %v1024
    %v1032 = vpack.c.b16 %v1027, %v1026
    %v1033 = vpack.c.b16 %v1029, %v1028
    %vm1038 = vcmask 523264
    %v1040 = vsel %vm1038, %v1009, 0
    %1042 = vmatprep.subr.bf16.mxu0 0
    %1043 = vmatpush1.bf16.msra.mxu0 0
    %1044 = vmatprep.subr.bf16.mxu0 0
    %1045 = vmatpush1.bf16.msra.mxu0 0
    %1046 = vmatprep.subr.bf16.mxu0 0
    %1047 = vmatpush1.bf16.msra.mxu0 0
    %1048 = vmatprep.subr.bf16.mxu0 0
    %1049 = vmatpush1.bf16.msra.mxu0 0
    %1050 = vmatprep.subr.bf16.mxu0 0
    %1051 = vmatpush1.bf16.msra.mxu0 %v1033
    %1052 = vmatprep.subr.bf16.mxu0 0
    %1053 = vmatpush1.bf16.msra.mxu0 %v1032
    %1054 = vmatprep.subr.bf16.mxu0 0
    %1055 = vmatpush1.bf16.msra.mxu0 %v1031
    %1056 = vmatprep.subr.bf16.mxu0 0
    %1057 = vmatpush1.bf16.msra.mxu0 %v1030
    %1058 = vmatprep.subr.bf16.mxu0 0
    %1059 = vmatpush2.bf16.msra.mxu0 0
    %1060 = vmatprep.subr.bf16.mxu0 0
    %1061 = vmatpush2.bf16.msra.mxu0 0
    %1062 = vmatprep.subr.bf16.mxu0 0
    %1063 = vmatpush2.bf16.msra.mxu0 0
    %1064 = vmatprep.subr.bf16.mxu0 0
    %1065 = vmatpush2.bf16.msra.mxu0 0
    %1066 = vmatprep.subr.bf16.mxu0 0
    %1067 = vmatpush2.bf16.msra.mxu0 0
    %1068 = vmatprep.subr.bf16.mxu0 0
    %1069 = vmatpush2.bf16.msra.mxu0 0
    %1070 = vmatprep.subr.bf16.mxu0 0
    %1071 = vmatpush2.bf16.msra.mxu0 0
    %1072 = vmatprep.subr.bf16.mxu0 0
    %1073 = vmatpush2.bf16.msra.mxu0 0
    %1074 = vmatprep.mubr.bf16.mxu0 0
    %1075 = vmatmul.mubr.bf16.gmra.mxu0 %v1040
    %v1076 = vpop.f32.mrf.mxu0
    %v1077 = vadd.f32 %v1012, %v1076
    %v1078 = vpop.f32.mrf.mxu0
    %v1079 = vpop.f32.mrf.mxu0
    %v1080 = vadd.f32 %v1013, %v1079
    %v1081 = vpop.f32.mrf.mxu0
    %1082 = vdwg.mxu0
    %v1083 = vadd.f32 %v908, %v1077
    %v1084 = vadd.f32 %v909, %v1080
    %v1085 = vld [vmem:[#allocation2 + $0xf0] sm:$0xf]
    %v1086 = vld [vmem:[#allocation2 + $0xf4] sm:$0xf]
    %v1087 = vunpack.c.l.bf16 %v1085
    %v1088 = vunpack.c.l.bf16 %v1086
    %v1089 = vld [vmem:[#allocation2 + $0xf8] sm:$0xf]
    %v1090 = vld [vmem:[#allocation2 + $0xfc] sm:$0xf]
    %v1091 = vunpack.c.l.bf16 %v1089
    %v1092 = vunpack.c.l.bf16 %v1090
    %v1093 = vsel %vm121, %v1083, 0.0
    %1094 = vadd.xlane.f32.xlu0 %v1093
    %v1095 = vpop.xlane.xlu0 %1094
    %v1096 = vsel %vm121, %v1084, 0.0
    %1097 = vadd.xlane.f32.xlu0 %v1096
    %v1098 = vpop.xlane.xlu0 %1097
    %v1099 = vmul.f32 %v1095, %v885
    %v1100 = vmul.f32 %v1098, %v885
    %v1101 = vsub.f32 %v1083, %v1099
    %v1102 = vsub.f32 %v1084, %v1100
    %v1103 = vmul.f32 %v1101, %v1101
    %v1104 = vmul.f32 %v1102, %v1102
    %v1105 = vsel %vm121, %v1103, 0.0
    %1106 = vadd.xlane.f32.xlu0 %v1105
    %v1107 = vpop.xlane.xlu0 %1106
    %v1108 = vsel %vm121, %v1104, 0.0
    %1109 = vadd.xlane.f32.xlu0 %v1108
    %v1110 = vpop.xlane.xlu0 %1109
    %v1111 = vmul.f32 %v1107, %v885
    %v1112 = vmul.f32 %v1110, %v885
    %v1113 = vadd.f32 %v1111, 1e-06
    %v1114 = vadd.f32 %v1112, 1e-06
    %v1115 = vrsqrt.pop %v1113
    %v1116 = vrsqrt.pop %v1114
    %v1117 = vmul.f32 %v1101, %v1115
    %v1118 = vmul.f32 %v1102, %v1116
    %v1119 = vmul.f32 %v1117, %v1087
    %v1120 = vmul.f32 %v1118, %v1088
    %v1121 = vadd.f32 %v1119, %v1091
    %v1122 = vadd.f32 %v1120, %v1092
    %v1123 = vld [vmem:[#allocation2 + $0x90] sm:$0xf]
    %v1124 = vpack.c.bf16 %v1122, %v1121
    %v1126 = vsel %vm57, %v1123, 0
    %1128 = vmatprep.subr.bf16.mxu0 0
    %1129 = vmatpush1.bf16.msra.mxu0 0
    %1130 = vmatprep.subr.bf16.mxu0 0
    %1131 = vmatpush1.bf16.msra.mxu0 0
    %1132 = vmatprep.subr.bf16.mxu0 0
    %1133 = vmatpush1.bf16.msra.mxu0 0
    %1134 = vmatprep.subr.bf16.mxu0 0
    %1135 = vmatpush1.bf16.msra.mxu0 0
    %1136 = vmatprep.subr.bf16.mxu0 0
    %1137 = vmatpush1.bf16.msra.mxu0 0
    %1138 = vmatprep.subr.bf16.mxu0 0
    %1139 = vmatpush1.bf16.msra.mxu0 0
    %1140 = vmatprep.subr.bf16.mxu0 0
    %1141 = vmatpush1.bf16.msra.mxu0 0
    %1142 = vmatprep.subr.bf16.mxu0 0
    %1143 = vmatpush1.bf16.msra.mxu0 %v1124
    %1144 = vmatprep.subr.bf16.mxu0 0
    %1145 = vmatpush2.bf16.msra.mxu0 0
    %1146 = vmatprep.subr.bf16.mxu0 0
    %1147 = vmatpush2.bf16.msra.mxu0 0
    %1148 = vmatprep.subr.bf16.mxu0 0
    %1149 = vmatpush2.bf16.msra.mxu0 0
    %1150 = vmatprep.subr.bf16.mxu0 0
    %1151 = vmatpush2.bf16.msra.mxu0 0
    %1152 = vmatprep.subr.bf16.mxu0 0
    %1153 = vmatpush2.bf16.msra.mxu0 0
    %1154 = vmatprep.subr.bf16.mxu0 0
    %1155 = vmatpush2.bf16.msra.mxu0 0
    %1156 = vmatprep.subr.bf16.mxu0 0
    %1157 = vmatpush2.bf16.msra.mxu0 0
    %1158 = vmatprep.subr.bf16.mxu0 0
    %1159 = vmatpush2.bf16.msra.mxu0 0
    %1160 = vmatprep.mubr.bf16.mxu0 0
    %1161 = vmatmul.mubr.bf16.gmra.mxu0 %v1126
    %v1162 = vpop.f32.mrf.mxu0
    %v1163 = vadd.f32 0.0, %v1162
    %v1164 = vpop.f32.mrf.mxu0
    %v1165 = vpop.f32.mrf.mxu0
    %v1166 = vpop.f32.mrf.mxu0
    %1167 = vdwg.mxu0
    %v1168 = vld [vmem:[%s0 + $0x10] sm:$0xff]
    %v1169 = vld [vmem:[#allocation2 + $0x94] sm:$0xf]
    %v1170 = vpack.c.bf16 %v1168, %v1168
    %v1171 = vld [vmem:[#allocation2 + $0x128] sm:$0xf]
    %v1172 = vunpack.c.l.bf16 %v1171
    %1173 = vmatprep.subr.bf16.mxu0 0
    %1174 = vmatpush1.bf16.xpose.msra.mxu0 0
    %1175 = vmatprep.subr.bf16.mxu0 0
    %1176 = vmatpush1.bf16.xpose.msra.mxu0 0
    %1177 = vmatprep.subr.bf16.mxu0 0
    %1178 = vmatpush1.bf16.xpose.msra.mxu0 0
    %1179 = vmatprep.subr.bf16.mxu0 0
    %1180 = vmatpush1.bf16.xpose.msra.mxu0 0
    %1181 = vmatprep.subr.bf16.mxu0 0
    %1182 = vmatpush1.bf16.xpose.msra.mxu0 0
    %1183 = vmatprep.subr.bf16.mxu0 0
    %1184 = vmatpush1.bf16.xpose.msra.mxu0 0
    %1185 = vmatprep.subr.bf16.mxu0 0
    %1186 = vmatpush1.bf16.xpose.msra.mxu0 0
    %1187 = vmatprep.subr.bf16.mxu0 0
    %1188 = vmatpush1.bf16.xpose.msra.mxu0 %v1169
    %1189 = vmatprep.subr.bf16.mxu0 0
    %1190 = vmatpush2.bf16.xpose.msra.mxu0 0
    %1191 = vmatprep.subr.bf16.mxu0 0
    %1192 = vmatpush2.bf16.xpose.msra.mxu0 0
    %1193 = vmatprep.subr.bf16.mxu0 0
    %1194 = vmatpush2.bf16.xpose.msra.mxu0 0
    %1195 = vmatprep.subr.bf16.mxu0 0
    %1196 = vmatpush2.bf16.xpose.msra.mxu0 0
    %1197 = vmatprep.subr.bf16.mxu0 0
    %1198 = vmatpush2.bf16.xpose.msra.mxu0 0
    %1199 = vmatprep.subr.bf16.mxu0 0
    %1200 = vmatpush2.bf16.xpose.msra.mxu0 0
    %1201 = vmatprep.subr.bf16.mxu0 0
    %1202 = vmatpush2.bf16.xpose.msra.mxu0 0
    %1203 = vmatprep.subr.bf16.mxu0 0
    %1204 = vmatpush2.bf16.xpose.msra.mxu0 0
    %1205 = vmatprep.mubr.bf16.mxu0 0
    %1206 = vmatmul.mubr.bf16.gmra.mxu0 %v1170
    %v1207 = vpop.f32.mrf.mxu0
    %v1208 = vadd.f32 %v1172, %v1207
    %v1209 = vpop.f32.mrf.mxu0
    %v1210 = vpop.f32.mrf.mxu0
    %v1211 = vpop.f32.mrf.mxu0
    %1212 = vdwg.mxu0
    %v1213 = vmax.f32 %v1208, 0.0
    %v1214 = vld [vmem:[#allocation2 + $0x98] sm:$0xf]
    %v1215 = vld [vmem:[#allocation2 + $0x9c] sm:$0xf]
    %v1216 = vpack.c.bf16 %v1163, %v1163
    %v1217 = vld [vmem:[#allocation2 + $0xa0] sm:$0xf]
    %v1218 = vld [vmem:[#allocation2 + $0xa4] sm:$0xf]
    %v1219 = vpack.c.bf16 %v1213, %v1213
    %v1222 = vunpack.c.l.b16 %v1217
    %v1223 = vunpack.c.l.b16 %v1218
    %v1224 = vpack.c.b16 %v1223, %v1222
    %vm1225 = vcmask 64512
    %v1227 = vsel %vm1225, %v1219, 0
    %v1230 = vsel %vm1225, %v1224, 0
    %1232 = vmatprep.subr.bf16.mxu0 0
    %1233 = vmatpush1.bf16.xpose.msra.mxu0 0
    %1234 = vmatprep.subr.bf16.mxu0 0
    %1235 = vmatpush1.bf16.xpose.msra.mxu0 0
    %1236 = vmatprep.subr.bf16.mxu0 0
    %1237 = vmatpush1.bf16.xpose.msra.mxu0 0
    %1238 = vmatprep.subr.bf16.mxu0 0
    %1239 = vmatpush1.bf16.xpose.msra.mxu0 0
    %1240 = vmatprep.subr.bf16.mxu0 0
    %1241 = vmatpush1.bf16.xpose.msra.mxu0 0
    %1242 = vmatprep.subr.bf16.mxu0 0
    %1243 = vmatpush1.bf16.xpose.msra.mxu0 0
    %1244 = vmatprep.subr.bf16.mxu0 0
    %1245 = vmatpush1.bf16.xpose.msra.mxu0 0
    %1246 = vmatprep.subr.bf16.mxu0 0
    %1247 = vmatpush1.bf16.xpose.msra.mxu0 %v1230
    %1248 = vmatprep.subr.bf16.mxu0 0
    %1249 = vmatpush2.bf16.xpose.msra.mxu0 0
    %1250 = vmatprep.subr.bf16.mxu0 0
    %1251 = vmatpush2.bf16.xpose.msra.mxu0 0
    %1252 = vmatprep.subr.bf16.mxu0 0
    %1253 = vmatpush2.bf16.xpose.msra.mxu0 0
    %1254 = vmatprep.subr.bf16.mxu0 0
    %1255 = vmatpush2.bf16.xpose.msra.mxu0 0
    %1256 = vmatprep.subr.bf16.mxu0 0
    %1257 = vmatpush2.bf16.xpose.msra.mxu0 0
    %1258 = vmatprep.subr.bf16.mxu0 0
    %1259 = vmatpush2.bf16.xpose.msra.mxu0 0
    %1260 = vmatprep.subr.bf16.mxu0 0
    %1261 = vmatpush2.bf16.xpose.msra.mxu0 0
    %1262 = vmatprep.subr.bf16.mxu0 0
    %1263 = vmatpush2.bf16.xpose.msra.mxu0 0
    %1264 = vmatprep.mubr.bf16.mxu0 0
    %1265 = vmatmul.mubr.bf16.gmra.mxu0 %v1227
    %v1266 = vpop.f32.mrf.mxu0
    %v1267 = vadd.f32 0.0, %v1266
    %v1268 = vpop.f32.mrf.mxu0
    %v1269 = vpop.f32.mrf.mxu0
    %v1270 = vpop.f32.mrf.mxu0
    %1271 = vdwg.mxu0
    %v1274 = vunpack.c.l.b16 %v1214
    %v1275 = vunpack.c.l.b16 %v1215
    %v1276 = vpack.c.b16 %v1275, %v1274
    %v1278 = vsel %vm121, %v1216, 0
    %v1281 = vsel %vm121, %v1276, 0
    %1283 = vmatprep.subr.bf16.mxu0 0
    %1284 = vmatpush1.bf16.xpose.msra.mxu0 0
    %1285 = vmatprep.subr.bf16.mxu0 0
    %1286 = vmatpush1.bf16.xpose.msra.mxu0 0
    %1287 = vmatprep.subr.bf16.mxu0 0
    %1288 = vmatpush1.bf16.xpose.msra.mxu0 0
    %1289 = vmatprep.subr.bf16.mxu0 0
    %1290 = vmatpush1.bf16.xpose.msra.mxu0 0
    %1291 = vmatprep.subr.bf16.mxu0 0
    %1292 = vmatpush1.bf16.xpose.msra.mxu0 0
    %1293 = vmatprep.subr.bf16.mxu0 0
    %1294 = vmatpush1.bf16.xpose.msra.mxu0 0
    %1295 = vmatprep.subr.bf16.mxu0 0
    %1296 = vmatpush1.bf16.xpose.msra.mxu0 0
    %1297 = vmatprep.subr.bf16.mxu0 0
    %1298 = vmatpush1.bf16.xpose.msra.mxu0 %v1281
    %1299 = vmatprep.subr.bf16.mxu0 0
    %1300 = vmatpush2.bf16.xpose.msra.mxu0 0
    %1301 = vmatprep.subr.bf16.mxu0 0
    %1302 = vmatpush2.bf16.xpose.msra.mxu0 0
    %1303 = vmatprep.subr.bf16.mxu0 0
    %1304 = vmatpush2.bf16.xpose.msra.mxu0 0
    %1305 = vmatprep.subr.bf16.mxu0 0
    %1306 = vmatpush2.bf16.xpose.msra.mxu0 0
    %1307 = vmatprep.subr.bf16.mxu0 0
    %1308 = vmatpush2.bf16.xpose.msra.mxu0 0
    %1309 = vmatprep.subr.bf16.mxu0 0
    %1310 = vmatpush2.bf16.xpose.msra.mxu0 0
    %1311 = vmatprep.subr.bf16.mxu0 0
    %1312 = vmatpush2.bf16.xpose.msra.mxu0 0
    %1313 = vmatprep.subr.bf16.mxu0 0
    %1314 = vmatpush2.bf16.xpose.msra.mxu0 0
    %1315 = vmatprep.mubr.bf16.mxu0 0
    %1316 = vmatmul.mubr.bf16.gmra.mxu0 %v1278
    %v1317 = vpop.f32.mrf.mxu0
    %v1318 = vadd.f32 %v1267, %v1317
    %v1319 = vpop.f32.mrf.mxu0
    %v1320 = vpop.f32.mrf.mxu0
    %v1321 = vpop.f32.mrf.mxu0
    %1322 = vdwg.mxu0
    %v1323 = vld [vmem:[#allocation2 + $0x12c] sm:$0xf]
    %v1324 = vunpack.c.l.bf16 %v1323
    %v1325 = vadd.f32 %v1318, %v1324
    %v1326 = vmax.f32 %v1325, 0.0
    %v1327 = vld [vmem:[#allocation2 + $0xa8] sm:$0xf]
    %v1328 = vld [vmem:[#allocation2 + $0xac] sm:$0xf]
    %v1329 = vpack.c.bf16 %v1326, %v1326
    %v1330 = vld [vmem:[#allocation2 + $0x130] sm:$0xf]
    %v1331 = vunpack.c.l.bf16 %v1330
    %v1334 = vunpack.c.l.b16 %v1327
    %v1335 = vunpack.c.l.b16 %v1328
    %v1336 = vpack.c.b16 %v1335, %v1334
    %v1339 = vsel %vm57, %v1329, 0
    %1341 = vmatprep.subr.bf16.mxu0 0
    %1342 = vmatpush1.bf16.msra.mxu0 0
    %1343 = vmatprep.subr.bf16.mxu0 0
    %1344 = vmatpush1.bf16.msra.mxu0 0
    %1345 = vmatprep.subr.bf16.mxu0 0
    %1346 = vmatpush1.bf16.msra.mxu0 0
    %1347 = vmatprep.subr.bf16.mxu0 0
    %1348 = vmatpush1.bf16.msra.mxu0 0
    %1349 = vmatprep.subr.bf16.mxu0 0
    %1350 = vmatpush1.bf16.msra.mxu0 0
    %1351 = vmatprep.subr.bf16.mxu0 0
    %1352 = vmatpush1.bf16.msra.mxu0 0
    %1353 = vmatprep.subr.bf16.mxu0 0
    %1354 = vmatpush1.bf16.msra.mxu0 0
    %1355 = vmatprep.subr.bf16.mxu0 0
    %1356 = vmatpush1.bf16.msra.mxu0 %v1336
    %1357 = vmatprep.subr.bf16.mxu0 0
    %1358 = vmatpush2.bf16.msra.mxu0 0
    %1359 = vmatprep.subr.bf16.mxu0 0
    %1360 = vmatpush2.bf16.msra.mxu0 0
    %1361 = vmatprep.subr.bf16.mxu0 0
    %1362 = vmatpush2.bf16.msra.mxu0 0
    %1363 = vmatprep.subr.bf16.mxu0 0
    %1364 = vmatpush2.bf16.msra.mxu0 0
    %1365 = vmatprep.subr.bf16.mxu0 0
    %1366 = vmatpush2.bf16.msra.mxu0 0
    %1367 = vmatprep.subr.bf16.mxu0 0
    %1368 = vmatpush2.bf16.msra.mxu0 0
    %1369 = vmatprep.subr.bf16.mxu0 0
    %1370 = vmatpush2.bf16.msra.mxu0 0
    %1371 = vmatprep.subr.bf16.mxu0 0
    %1372 = vmatpush2.bf16.msra.mxu0 0
    %1373 = vmatprep.mubr.bf16.mxu0 0
    %1374 = vmatmul.mubr.bf16.gmra.mxu0 %v1339
    %v1375 = vpop.f32.mrf.mxu0
    %v1376 = vadd.f32 %v1331, %v1375
    %v1377 = vpop.f32.mrf.mxu0
    %v1378 = vpop.f32.mrf.mxu0
    %v1379 = vpop.f32.mrf.mxu0
    %1380 = vdwg.mxu0
    %1381 = vst [vmem:[%s2] sm:$0xff] %v1376
    // Predicated region
    $region14: #{pt_model_forward.1} parent=1 // pred_check
      _
    $region15: #{pt_model_forward.1} parent=1 // pred_check_branch
      %1383 = sbr.rel (0) target = $region17
    $region16: #{pt_model_forward.1} parent=1 // pred_region
      _
    $region17: #{pt_model_forward.1} parent=1 // pred_fallthru
      _
    // Predicated region
    $region18: #{pt_model_forward.1} parent=1 // pred_check
      _
    $region19: #{pt_model_forward.1} parent=1 // pred_check_branch
      %1385 = sbr.rel (0) target = $region21
    $region20: #{pt_model_forward.1} parent=1 // pred_region
      _
    $region21: #{pt_model_forward.1} parent=1 // pred_fallthru
      _
    %1386 = vsyncpa [#allocation3], 1

</llo_original>
